<compile_context>
chip_gen: v6e
topology: v6e:2x2x1
jax: 0.10.0
libtpu: 0.0.40
codegen_flags: <defaults>
</compile_context>

<pallas_src>
import jax
import jax.numpy as jnp
from jax import lax
from jax.experimental import pallas as pl
from jax.experimental.pallas import tpu as pltpu


def _mrconv_kernel(idx_j_ref, idx_i_ref, x_ref, wx_ref, wj_ref, bias_ref, o_ref):
    bt, c, n_pad = x_ref.shape
    kn = idx_j_ref.shape[2]
    num_k = kn // n_pad

    # Loop invariants hoisted out of the batch loop (JAX does not CSE broadcasts).
    iota_m = lax.broadcasted_iota(jnp.int32, (n_pad, kn), 0)   # source-vertex id per sublane row
    wx = wx_ref[...]                                           # (Cout, C)  weights on x   (even slots)
    wj = wj_ref[...]                                           # (Cout, C)  weights on rel (odd slots)
    bias = bias_ref[...]                                       # (Cout, 1)

    def body(b, carry):
        x_b = x_ref[b]                                         # (C, N_pad)     lane-dense
        i_j = idx_j_ref[b]                                     # (1, K*N_pad)   neighbor idx per column
        i_i = idx_i_ref[b]                                     # (1, K*N_pad)   center   idx per column

        # Fused gather matrix (oh_j - oh_i): one VPU build + ONE MXU matmul for all K neighbors.
        d_t = ((iota_m == i_j).astype(jnp.float32)
               - (iota_m == i_i).astype(jnp.float32))          # (N_pad, K*N_pad), exact {-1,0,+1}
        g = jnp.dot(x_b, d_t, preferred_element_type=jnp.float32)   # (C, K*N_pad) = x_j - x_i per k

        # max over K: K-1 elementwise maxima over 128-lane-aligned static slices (pure vreg ops).
        rel = g[:, :n_pad]
        for kk in range(1, num_k):
            rel = jnp.maximum(rel, g[:, kk * n_pad:(kk + 1) * n_pad])

        # 1x1x1 conv (interleaved channels == even/odd weight split) + bias + ReLU, lane-dense out.
        out = (jnp.dot(wx, x_b, preferred_element_type=jnp.float32)
               + jnp.dot(wj, rel, preferred_element_type=jnp.float32)
               + bias)                                         # (Cout, N_pad)
        o_ref[b] = jnp.maximum(out, 0.0)
        return carry

    lax.fori_loop(0, bt, body, 0, unroll=True)


def graph_conv_mr(x, edge_index, W, b):
    """x: (B, C, N, 1) f32; edge_index: (2, B, N, K) int; W: (Cout, 2C); b: (Cout,)."""
    B, C, N, _ = x.shape
    K = edge_index.shape[-1]
    Cout = W.shape[0]

    n_pad = ((N + 127) // 128) * 128          # lane-dense vertex axis
    bt = min(B, 8)                            # batch elements per grid step (amortize ~0.35us/step)
    b_pad = ((B + bt - 1) // bt) * bt

    # x is already channel-first (B, C, N); just pad to lane multiples (wrapper-side plumbing).
    x_p = jnp.pad(x[..., 0].astype(jnp.float32),
                  ((0, b_pad - B), (0, 0), (0, n_pad - N)))                 # (B_pad, C, N_pad)

    # k-major flatten of the indices: idx[b, 0, k*N_pad + n] = edge_index[., b, n, k].
    idx = jnp.transpose(edge_index.astype(jnp.int32), (0, 1, 3, 2))         # (2, B, K, N)
    idx = jnp.pad(idx, ((0, 0), (0, b_pad - B), (0, 0), (0, n_pad - N)))    # pad points at vertex 0
    idx = idx.reshape(2, b_pad, 1, K * n_pad)
    idx_j, idx_i = idx[0], idx[1]

    # Channel interleaving of [x, rel] maps to even/odd input-channel slices of the conv weight.
    Wx = W[:, 0::2].astype(jnp.float32)                                     # (Cout, C)
    Wj = W[:, 1::2].astype(jnp.float32)                                     # (Cout, C)
    bias = b.reshape(Cout, 1).astype(jnp.float32)

    out = pl.pallas_call(
        _mrconv_kernel,
        out_shape=jax.ShapeDtypeStruct((b_pad, Cout, n_pad), jnp.float32),
        grid=(b_pad // bt,),
        in_specs=[
            pl.BlockSpec((bt, 1, K * n_pad), lambda i: (i, 0, 0)),
            pl.BlockSpec((bt, 1, K * n_pad), lambda i: (i, 0, 0)),
            pl.BlockSpec((bt, C, n_pad), lambda i: (i, 0, 0)),
            pl.BlockSpec((Cout, C), lambda i: (0, 0)),
            pl.BlockSpec((Cout, C), lambda i: (0, 0)),
            pl.BlockSpec((Cout, 1), lambda i: (0, 0)),
        ],
        out_specs=pl.BlockSpec((bt, Cout, n_pad), lambda i: (i, 0, 0)),
        compiler_params=pltpu.CompilerParams(dimension_semantics=("parallel",)),
    )(idx_j, idx_i, x_p, Wx, Wj, bias)

    # Drop padding; back to the PyTorch Conv3d output layout (B, Cout, N, 1, 1).
    return out[:B, :, :N][..., None, None]


def _reference(x, edge_index, W, b):
    """Pure-JAX re-implementation of the PyTorch MRConv forward (for checking)."""
    B, C, N, _ = x.shape
    x2 = x[..., 0]                                                  # (B, C, N)
    idx0, idx1 = edge_index[0], edge_index[1]                       # (B, N, K)
    gather = jax.vmap(lambda xb, ib: xb[:, ib])                     # -> (C, N, K)
    x_j = gather(x2, idx0)
    x_i = gather(x2, idx1)
    rel_max = jnp.max(x_j - x_i, axis=-1)                           # (B, C, N)
    feat = jnp.stack([x2, rel_max], axis=2).reshape(B, 2 * C, N)    # interleaved channels
    out = jnp.einsum('oc,bcn->bon', W, feat) + b[None, :, None]
    out = jnp.maximum(out, 0.0)
    return out[..., None, None]                                     # (B, Cout, N, 1, 1)


if __name__ == "__main__":
    B, C, N, K = 2, 8, 64, 8
    Cout = 16

    key = jax.random.PRNGKey(0)
    kx, ke, kw, kb = jax.random.split(key, 4)

    x = jax.random.normal(kx, (B, C, N, 1), dtype=jnp.float32)
    edge_index = jax.random.randint(ke, (2, B, N, K), 0, N, dtype=jnp.int32)
    W = jax.random.normal(kw, (Cout, 2 * C), dtype=jnp.float32) * 0.1   # Conv3d weight (Cout,2C,1,1,1) squeezed
    b = jax.random.normal(kb, (Cout,), dtype=jnp.float32) * 0.1

    out = graph_conv_mr(x, edge_index, W, b)
    out = jax.block_until_ready(out)

    ref = _reference(x, edge_index, W, b)
    assert out.shape == (B, Cout, N, 1, 1), out.shape
    assert jnp.allclose(out, ref, rtol=1e-5, atol=1e-5), float(jnp.max(jnp.abs(out - ref)))

    print("KERNEL_OK")
</pallas_src>

<mosaic_0001>
module attributes {stable_mosaic.version = 11 : i64} {
  func.func @_mrconv_kernel(%arg0: i32, %arg1: memref<2x1x1024xi32, #tpu.memory_space<vmem>>, %arg2: memref<2x1x1024xi32, #tpu.memory_space<vmem>>, %arg3: memref<2x8x128xf32, #tpu.memory_space<vmem>>, %arg4: memref<16x8xf32, #tpu.memory_space<vmem>>, %arg5: memref<16x8xf32, #tpu.memory_space<vmem>>, %arg6: memref<16x1xf32, #tpu.memory_space<vmem>>, %arg7: memref<2x16x128xf32, #tpu.memory_space<vmem>>) attributes {dimension_semantics = [#tpu.dimension_semantics<parallel>], iteration_bounds = array<i64: 1>, scalar_prefetch = 0 : i64, scratch_operands = 0 : i64, tpu.core_type = #tpu.core_type<tc>, window_params = [{transform_indices = @transform_0, window_bounds = array<i64: 2, 1, 1024>}, {transform_indices = @transform_1, window_bounds = array<i64: 2, 1, 1024>}, {transform_indices = @transform_2, window_bounds = array<i64: 2, 8, 128>}, {pipeline_mode = #tpu.pipeline_mode<synchronous>, transform_indices = @transform_3, window_bounds = array<i64: 16, 8>}, {pipeline_mode = #tpu.pipeline_mode<synchronous>, transform_indices = @transform_4, window_bounds = array<i64: 16, 8>}, {pipeline_mode = #tpu.pipeline_mode<synchronous>, transform_indices = @transform_5, window_bounds = array<i64: 16, 1>}, {transform_indices = @transform_6, window_bounds = array<i64: 2, 16, 128>}]} {
    %0 = tpu.iota {dimensions = array<i32: 0>} : vector<128x1024xi32>
    %c0 = arith.constant 0 : index
    %c0_0 = arith.constant 0 : index
    %1 = vector.load %arg4[%c0, %c0_0] : memref<16x8xf32, #tpu.memory_space<vmem>>, vector<16x8xf32>
    %c0_1 = arith.constant 0 : index
    %c0_2 = arith.constant 0 : index
    %2 = vector.load %arg5[%c0_1, %c0_2] : memref<16x8xf32, #tpu.memory_space<vmem>>, vector<16x8xf32>
    %c0_3 = arith.constant 0 : index
    %c0_4 = arith.constant 0 : index
    %3 = vector.load %arg6[%c0_3, %c0_4] : memref<16x1xf32, #tpu.memory_space<vmem>>, vector<16x1xf32>
    %c0_i32 = arith.constant 0 : i32
    %4 = arith.index_cast %c0_i32 : i32 to index
    %c0_5 = arith.constant 0 : index
    %c0_6 = arith.constant 0 : index
    %5 = vector.load %arg3[%4, %c0_5, %c0_6] : memref<2x8x128xf32, #tpu.memory_space<vmem>>, vector<1x8x128xf32>
    %6 = vector.shape_cast %5 : vector<1x8x128xf32> to vector<8x128xf32>
    %7 = arith.index_cast %c0_i32 : i32 to index
    %c0_7 = arith.constant 0 : index
    %c0_8 = arith.constant 0 : index
    %8 = vector.load %arg1[%7, %c0_7, %c0_8] : memref<2x1x1024xi32, #tpu.memory_space<vmem>>, vector<1x1x1024xi32>
    %9 = vector.shape_cast %8 : vector<1x1x1024xi32> to vector<1x1024xi32>
    %10 = arith.index_cast %c0_i32 : i32 to index
    %c0_9 = arith.constant 0 : index
    %c0_10 = arith.constant 0 : index
    %11 = vector.load %arg2[%10, %c0_9, %c0_10] : memref<2x1x1024xi32, #tpu.memory_space<vmem>>, vector<1x1x1024xi32>
    %12 = vector.shape_cast %11 : vector<1x1x1024xi32> to vector<1x1024xi32>
    %13 = vector.broadcast %9 : vector<1x1024xi32> to vector<128x1024xi32>
    %14 = arith.cmpi eq, %0, %13 : vector<128x1024xi32>
    %15 = arith.extui %14 : vector<128x1024xi1> to vector<128x1024xi32>
    %16 = arith.sitofp %15 : vector<128x1024xi32> to vector<128x1024xf32>
    %17 = vector.broadcast %12 : vector<1x1024xi32> to vector<128x1024xi32>
    %18 = arith.cmpi eq, %0, %17 : vector<128x1024xi32>
    %19 = arith.extui %18 : vector<128x1024xi1> to vector<128x1024xi32>
    %20 = arith.sitofp %19 : vector<128x1024xi32> to vector<128x1024xf32>
    %21 = arith.subf %16, %20 : vector<128x1024xf32>
    %cst = arith.constant dense<0.000000e+00> : vector<8x1024xf32>
    %22 = tpu.matmul %6, %21, %cst {dimension_numbers = #tpu.dot_dimension_numbers<[1], [0], [0], [1], [0, 0, 1, 1], [], []>} : vector<8x128xf32>, vector<128x1024xf32>, vector<8x1024xf32> -> vector<8x1024xf32>
    %23 = vector.extract_strided_slice %22 {offsets = [0, 0], sizes = [8, 128], strides = [1, 1]} : vector<8x1024xf32> to vector<8x128xf32>
    %24 = vector.extract_strided_slice %22 {offsets = [0, 128], sizes = [8, 128], strides = [1, 1]} : vector<8x1024xf32> to vector<8x128xf32>
    %25 = arith.maximumf %23, %24 : vector<8x128xf32>
    %26 = vector.extract_strided_slice %22 {offsets = [0, 256], sizes = [8, 128], strides = [1, 1]} : vector<8x1024xf32> to vector<8x128xf32>
    %27 = arith.maximumf %25, %26 : vector<8x128xf32>
    %28 = vector.extract_strided_slice %22 {offsets = [0, 384], sizes = [8, 128], strides = [1, 1]} : vector<8x1024xf32> to vector<8x128xf32>
    %29 = arith.maximumf %27, %28 : vector<8x128xf32>
    %30 = vector.extract_strided_slice %22 {offsets = [0, 512], sizes = [8, 128], strides = [1, 1]} : vector<8x1024xf32> to vector<8x128xf32>
    %31 = arith.maximumf %29, %30 : vector<8x128xf32>
    %32 = vector.extract_strided_slice %22 {offsets = [0, 640], sizes = [8, 128], strides = [1, 1]} : vector<8x1024xf32> to vector<8x128xf32>
    %33 = arith.maximumf %31, %32 : vector<8x128xf32>
    %34 = vector.extract_strided_slice %22 {offsets = [0, 768], sizes = [8, 128], strides = [1, 1]} : vector<8x1024xf32> to vector<8x128xf32>
    %35 = arith.maximumf %33, %34 : vector<8x128xf32>
    %36 = vector.extract_strided_slice %22 {offsets = [0, 896], sizes = [8, 128], strides = [1, 1]} : vector<8x1024xf32> to vector<8x128xf32>
    %37 = arith.maximumf %35, %36 : vector<8x128xf32>
    %cst_11 = arith.constant dense<0.000000e+00> : vector<16x128xf32>
    %38 = tpu.matmul %1, %6, %cst_11 {dimension_numbers = #tpu.dot_dimension_numbers<[1], [0], [0], [1], [0, 0, 1, 1], [], []>} : vector<16x8xf32>, vector<8x128xf32>, vector<16x128xf32> -> vector<16x128xf32>
    %cst_12 = arith.constant dense<0.000000e+00> : vector<16x128xf32>
    %39 = tpu.matmul %2, %37, %cst_12 {dimension_numbers = #tpu.dot_dimension_numbers<[1], [0], [0], [1], [0, 0, 1, 1], [], []>} : vector<16x8xf32>, vector<8x128xf32>, vector<16x128xf32> -> vector<16x128xf32>
    %40 = arith.addf %38, %39 : vector<16x128xf32>
    %41 = vector.broadcast %3 : vector<16x1xf32> to vector<16x128xf32>
    %42 = arith.addf %40, %41 : vector<16x128xf32>
    %cst_13 = arith.constant 0.000000e+00 : f32
    %43 = vector.broadcast %cst_13 : f32 to vector<16x128xf32>
    %44 = arith.maximumf %42, %43 : vector<16x128xf32>
    %45 = arith.index_cast %c0_i32 : i32 to index
    %c0_14 = arith.constant 0 : index
    %c0_15 = arith.constant 0 : index
    %46 = vector.load %arg7[%45, %c0_14, %c0_15] : memref<2x16x128xf32, #tpu.memory_space<vmem>>, vector<1x16x128xf32>
    %47 = vector.shape_cast %46 : vector<1x16x128xf32> to vector<16x128xf32>
    %48 = vector.shape_cast %44 : vector<16x128xf32> to vector<1x16x128xf32>
    tpu.vector_store %arg7[%45, %c0_14, %c0_15], %48 {strides = array<i32>} : memref<2x16x128xf32, #tpu.memory_space<vmem>>, vector<1x16x128xf32>,
    %c1_i32 = arith.constant 1 : i32
    %49 = arith.index_cast %c1_i32 : i32 to index
    %c0_16 = arith.constant 0 : index
    %c0_17 = arith.constant 0 : index
    %50 = vector.load %arg3[%49, %c0_16, %c0_17] : memref<2x8x128xf32, #tpu.memory_space<vmem>>, vector<1x8x128xf32>
    %51 = vector.shape_cast %50 : vector<1x8x128xf32> to vector<8x128xf32>
    %52 = arith.index_cast %c1_i32 : i32 to index
    %c0_18 = arith.constant 0 : index
    %c0_19 = arith.constant 0 : index
    %53 = vector.load %arg1[%52, %c0_18, %c0_19] : memref<2x1x1024xi32, #tpu.memory_space<vmem>>, vector<1x1x1024xi32>
    %54 = vector.shape_cast %53 : vector<1x1x1024xi32> to vector<1x1024xi32>
    %55 = arith.index_cast %c1_i32 : i32 to index
    %c0_20 = arith.constant 0 : index
    %c0_21 = arith.constant 0 : index
    %56 = vector.load %arg2[%55, %c0_20, %c0_21] : memref<2x1x1024xi32, #tpu.memory_space<vmem>>, vector<1x1x1024xi32>
    %57 = vector.shape_cast %56 : vector<1x1x1024xi32> to vector<1x1024xi32>
    %58 = vector.broadcast %54 : vector<1x1024xi32> to vector<128x1024xi32>
    %59 = arith.cmpi eq, %0, %58 : vector<128x1024xi32>
    %60 = arith.extui %59 : vector<128x1024xi1> to vector<128x1024xi32>
    %61 = arith.sitofp %60 : vector<128x1024xi32> to vector<128x1024xf32>
    %62 = vector.broadcast %57 : vector<1x1024xi32> to vector<128x1024xi32>
    %63 = arith.cmpi eq, %0, %62 : vector<128x1024xi32>
    %64 = arith.extui %63 : vector<128x1024xi1> to vector<128x1024xi32>
    %65 = arith.sitofp %64 : vector<128x1024xi32> to vector<128x1024xf32>
    %66 = arith.subf %61, %65 : vector<128x1024xf32>
    %cst_22 = arith.constant dense<0.000000e+00> : vector<8x1024xf32>
    %67 = tpu.matmul %51, %66, %cst_22 {dimension_numbers = #tpu.dot_dimension_numbers<[1], [0], [0], [1], [0, 0, 1, 1], [], []>} : vector<8x128xf32>, vector<128x1024xf32>, vector<8x1024xf32> -> vector<8x1024xf32>
    %68 = vector.extract_strided_slice %67 {offsets = [0, 0], sizes = [8, 128], strides = [1, 1]} : vector<8x1024xf32> to vector<8x128xf32>
    %69 = vector.extract_strided_slice %67 {offsets = [0, 128], sizes = [8, 128], strides = [1, 1]} : vector<8x1024xf32> to vector<8x128xf32>
    %70 = arith.maximumf %68, %69 : vector<8x128xf32>
    %71 = vector.extract_strided_slice %67 {offsets = [0, 256], sizes = [8, 128], strides = [1, 1]} : vector<8x1024xf32> to vector<8x128xf32>
    %72 = arith.maximumf %70, %71 : vector<8x128xf32>
    %73 = vector.extract_strided_slice %67 {offsets = [0, 384], sizes = [8, 128], strides = [1, 1]} : vector<8x1024xf32> to vector<8x128xf32>
    %74 = arith.maximumf %72, %73 : vector<8x128xf32>
    %75 = vector.extract_strided_slice %67 {offsets = [0, 512], sizes = [8, 128], strides = [1, 1]} : vector<8x1024xf32> to vector<8x128xf32>
    %76 = arith.maximumf %74, %75 : vector<8x128xf32>
    %77 = vector.extract_strided_slice %67 {offsets = [0, 640], sizes = [8, 128], strides = [1, 1]} : vector<8x1024xf32> to vector<8x128xf32>
    %78 = arith.maximumf %76, %77 : vector<8x128xf32>
    %79 = vector.extract_strided_slice %67 {offsets = [0, 768], sizes = [8, 128], strides = [1, 1]} : vector<8x1024xf32> to vector<8x128xf32>
    %80 = arith.maximumf %78, %79 : vector<8x128xf32>
    %81 = vector.extract_strided_slice %67 {offsets = [0, 896], sizes = [8, 128], strides = [1, 1]} : vector<8x1024xf32> to vector<8x128xf32>
    %82 = arith.maximumf %80, %81 : vector<8x128xf32>
    %cst_23 = arith.constant dense<0.000000e+00> : vector<16x128xf32>
    %83 = tpu.matmul %1, %51, %cst_23 {dimension_numbers = #tpu.dot_dimension_numbers<[1], [0], [0], [1], [0, 0, 1, 1], [], []>} : vector<16x8xf32>, vector<8x128xf32>, vector<16x128xf32> -> vector<16x128xf32>
    %cst_24 = arith.constant dense<0.000000e+00> : vector<16x128xf32>
    %84 = tpu.matmul %2, %82, %cst_24 {dimension_numbers = #tpu.dot_dimension_numbers<[1], [0], [0], [1], [0, 0, 1, 1], [], []>} : vector<16x8xf32>, vector<8x128xf32>, vector<16x128xf32> -> vector<16x128xf32>
    %85 = arith.addf %83, %84 : vector<16x128xf32>
    %86 = vector.broadcast %3 : vector<16x1xf32> to vector<16x128xf32>
    %87 = arith.addf %85, %86 : vector<16x128xf32>
    %cst_25 = arith.constant 0.000000e+00 : f32
    %88 = vector.broadcast %cst_25 : f32 to vector<16x128xf32>
    %89 = arith.maximumf %87, %88 : vector<16x128xf32>
    %90 = arith.index_cast %c1_i32 : i32 to index
    %c0_26 = arith.constant 0 : index
    %c0_27 = arith.constant 0 : index
    %91 = vector.load %arg7[%90, %c0_26, %c0_27] : memref<2x16x128xf32, #tpu.memory_space<vmem>>, vector<1x16x128xf32>
    %92 = vector.shape_cast %91 : vector<1x16x128xf32> to vector<16x128xf32>
    %93 = vector.shape_cast %89 : vector<16x128xf32> to vector<1x16x128xf32>
    tpu.vector_store %arg7[%90, %c0_26, %c0_27], %93 {strides = array<i32>} : memref<2x16x128xf32, #tpu.memory_space<vmem>>, vector<1x16x128xf32>,
    %c2_i32 = arith.constant 2 : i32
    return
  }
  func.func @transform_0(%arg0: i32) -> (i32, i32, i32) {
    %c0_i32 = arith.constant 0 : i32
    %c0_i32_0 = arith.constant 0 : i32
    %c0_i32_1 = arith.constant 0 : i32
    return %arg0, %c0_i32, %c0_i32_0 : i32, i32, i32
  }
  func.func @transform_1(%arg0: i32) -> (i32, i32, i32) {
    %c0_i32 = arith.constant 0 : i32
    %c0_i32_0 = arith.constant 0 : i32
    %c0_i32_1 = arith.constant 0 : i32
    return %arg0, %c0_i32, %c0_i32_0 : i32, i32, i32
  }
  func.func @transform_2(%arg0: i32) -> (i32, i32, i32) {
    %c0_i32 = arith.constant 0 : i32
    %c0_i32_0 = arith.constant 0 : i32
    %c0_i32_1 = arith.constant 0 : i32
    return %arg0, %c0_i32, %c0_i32_0 : i32, i32, i32
  }
  func.func @transform_3(%arg0: i32) -> (i32, i32) {
    %c0_i32 = arith.constant 0 : i32
    %c0_i32_0 = arith.constant 0 : i32
    %c0_i32_1 = arith.constant 0 : i32
    return %c0_i32, %c0_i32_0 : i32, i32
  }
  func.func @transform_4(%arg0: i32) -> (i32, i32) {
    %c0_i32 = arith.constant 0 : i32
    %c0_i32_0 = arith.constant 0 : i32
    %c0_i32_1 = arith.constant 0 : i32
    return %c0_i32, %c0_i32_0 : i32, i32
  }
  func.func @transform_5(%arg0: i32) -> (i32, i32) {
    %c0_i32 = arith.constant 0 : i32
    %c0_i32_0 = arith.constant 0 : i32
    %c0_i32_1 = arith.constant 0 : i32
    return %c0_i32, %c0_i32_0 : i32, i32
  }
  func.func @transform_6(%arg0: i32) -> (i32, i32, i32) {
    %c0_i32 = arith.constant 0 : i32
    %c0_i32_0 = arith.constant 0 : i32
    %c0_i32_1 = arith.constant 0 : i32
    return %arg0, %c0_i32, %c0_i32_0 : i32, i32, i32
  }
}

</mosaic_0001>

<llo_original>
// kernel: tpu_custom_call.1
$region0: #{tpu_custom_call.1}
  #allocation0 [shape = 'u32[]', space=smem, size = 0x4, offset = 0x4, fixed_abs, tag = 'smem constant byte address 0x4 - core index']
  #allocation1 [shape = 'u32[144,128]{1,0:T(1,128)}', space=vmem, size = 0x12000, scoped, tag = 'internal scratch']
  %s0 = inlined_call_operand.vmem [shape: s32[2,1,1024], index: 0, kind: input, shape index: {}]
  %s1 = inlined_call_operand.vmem [shape: s32[2,1,1024], index: 1, kind: input, shape index: {}]
  %s2 = inlined_call_operand.vmem [shape: f32[2,8,128], index: 2, kind: input, shape index: {}]
  %s3 = inlined_call_operand.vmem [shape: f32[16,8], index: 3, kind: input, shape index: {}]
  %s4 = inlined_call_operand.vmem [shape: f32[16,8], index: 4, kind: input, shape index: {}]
  %s5 = inlined_call_operand.vmem [shape: f32[16,1], index: 5, kind: input, shape index: {}]
  %s6 = inlined_call_operand.hbm [shape: f32[2,16,128], index: 6, kind: output, shape index: {}]
  %s7 = sld [smem:[#allocation0]]
  $region34: #{tpu_custom_call.1} parent=0
    _
  %s9 = ssub.s32 1, %s7
  %s10 = scalar_select 0, %s9, %s7
  $region1: #{tpu_custom_call.1} parent=0
    #allocation2 [shape = 'u8[16384]{0}', space=vmem, size = 0x4000, scoped, tag = 'output window, operand 0, single buffered']
    #allocation3 [shape = 's32[1]{0}', space=sflag, size = 0x4, scoped, tag = 'scoped memory for tpu_custom_call.1']
    %11 = vsyncpa [#allocation3], 0
    // Predicated region
    $region2: #{tpu_custom_call.1} parent=1 // pred_check
      _
    $region3: #{tpu_custom_call.1} parent=1 // pred_check_branch
      %13 = sbr.rel (0) target = $region5
    $region4: #{tpu_custom_call.1} parent=1 // pred_region
      _
    $region5: #{tpu_custom_call.1} parent=1 // pred_fallthru
      _
    // Predicated region
    $region6: #{tpu_custom_call.1} parent=1 // pred_check
      _
    $region7: #{tpu_custom_call.1} parent=1 // pred_check_branch
      %15 = sbr.rel (0) target = $region9
    $region8: #{tpu_custom_call.1} parent=1 // pred_region
      _
    $region9: #{tpu_custom_call.1} parent=1 // pred_fallthru
      _
    // Predicated region
    $region10: #{tpu_custom_call.1} parent=1 // pred_check
      _
    $region11: #{tpu_custom_call.1} parent=1 // pred_check_branch
      %17 = sbr.rel (0) target = $region13
    $region12: #{tpu_custom_call.1} parent=1 // pred_region
      _
    $region13: #{tpu_custom_call.1} parent=1 // pred_fallthru
      _
    // Predicated region
    $region14: #{tpu_custom_call.1} parent=1 // pred_check
      _
    $region15: #{tpu_custom_call.1} parent=1 // pred_check_branch
      %19 = sbr.rel (0) target = $region17
    $region16: #{tpu_custom_call.1} parent=1 // pred_region
      _
    $region17: #{tpu_custom_call.1} parent=1 // pred_fallthru
      _
    // Predicated region
    $region18: #{tpu_custom_call.1} parent=1 // pred_check
      _
    $region19: #{tpu_custom_call.1} parent=1 // pred_check_branch
      %21 = sbr.rel (0) target = $region21
    $region20: #{tpu_custom_call.1} parent=1 // pred_region
      _
    $region21: #{tpu_custom_call.1} parent=1 // pred_fallthru
      _
    // Predicated region
    $region22: #{tpu_custom_call.1} parent=1 // pred_check
      _
    $region23: #{tpu_custom_call.1} parent=1 // pred_check_branch
      %23 = sbr.rel (0) target = $region25
    $region24: #{tpu_custom_call.1} parent=1 // pred_region
      _
    $region25: #{tpu_custom_call.1} parent=1 // pred_fallthru
      _
    %v24 = vlaneseq
    %v25 = vshrl.u32 %v24, 7
    %v26 = vadd.s32 %v25, 8
    %v27 = vadd.s32 %v25, 16
    %v28 = vadd.s32 %v25, 24
    %v29 = vadd.s32 %v25, 32
    %v30 = vadd.s32 %v25, 40
    %v31 = vadd.s32 %v25, 48
    %v32 = vadd.s32 %v25, 56
    %v33 = vadd.s32 %v25, 64
    %v34 = vadd.s32 %v25, 72
    %v35 = vadd.s32 %v25, 80
    %v36 = vadd.s32 %v25, 88
    %v37 = vadd.s32 %v25, 96
    %v38 = vadd.s32 %v25, 104
    %v39 = vadd.s32 %v25, 112
    %v40 = vadd.s32 %v25, 120
    %v41 = vld [vmem:[%s3] sm:$0xff]
    %v42 = vld [vmem:[%s3 + $0x8] sm:$0xff]
    %v43 = vld [vmem:[%s4] sm:$0xff]
    %v44 = vld [vmem:[%s4 + $0x8] sm:$0xff]
    %v45 = vld [vmem:[%s5] sm:$0xff]
    %v46 = vld [vmem:[%s5 + $0x8] sm:$0xff]
    %v47 = vld [vmem:[%s2] sm:$0xff]
    %v48 = vld [vmem:[%s0] sm:$0xff]
    %v49 = vld [vmem:[%s1] sm:$0xff]
    %v50 = vlaneseq
    %v51 = vshrl.u32 %v50, 7
    %v52 = vsub.s32 0, %v51
    %v53 = vrot.slane %v48, %v52
    %v54 = vlaneseq
    %v55 = vshrl.u32 %v54, 7
    %v56 = vsub.s32 1, %v55
    %v57 = vrot.slane %v48, %v56
    %v58 = vlaneseq
    %v59 = vshrl.u32 %v58, 7
    %v60 = vsub.s32 2, %v59
    %v61 = vrot.slane %v48, %v60
    %v62 = vlaneseq
    %v63 = vshrl.u32 %v62, 7
    %v64 = vsub.s32 3, %v63
    %v65 = vrot.slane %v48, %v64
    %v66 = vlaneseq
    %v67 = vshrl.u32 %v66, 7
    %v68 = vsub.s32 4, %v67
    %v69 = vrot.slane %v48, %v68
    %v70 = vlaneseq
    %v71 = vshrl.u32 %v70, 7
    %v72 = vsub.s32 5, %v71
    %v73 = vrot.slane %v48, %v72
    %v74 = vlaneseq
    %v75 = vshrl.u32 %v74, 7
    %v76 = vsub.s32 6, %v75
    %v77 = vrot.slane %v48, %v76
    %v78 = vlaneseq
    %v79 = vshrl.u32 %v78, 7
    %v80 = vsub.s32 7, %v79
    %v81 = vrot.slane %v48, %v80
    %vm82 = vcmp.eq.s32.totalorder %v25, %v53
    %vm83 = vcmp.eq.s32.totalorder %v25, %v57
    %vm84 = vcmp.eq.s32.totalorder %v25, %v61
    %vm85 = vcmp.eq.s32.totalorder %v25, %v65
    %vm86 = vcmp.eq.s32.totalorder %v25, %v69
    %vm87 = vcmp.eq.s32.totalorder %v25, %v73
    %vm88 = vcmp.eq.s32.totalorder %v25, %v77
    %vm89 = vcmp.eq.s32.totalorder %v25, %v81
    %vm90 = vcmp.eq.s32.totalorder %v26, %v53
    %vm91 = vcmp.eq.s32.totalorder %v26, %v57
    %vm92 = vcmp.eq.s32.totalorder %v26, %v61
    %vm93 = vcmp.eq.s32.totalorder %v26, %v65
    %vm94 = vcmp.eq.s32.totalorder %v26, %v69
    %vm95 = vcmp.eq.s32.totalorder %v26, %v73
    %vm96 = vcmp.eq.s32.totalorder %v26, %v77
    %vm97 = vcmp.eq.s32.totalorder %v26, %v81
    %vm98 = vcmp.eq.s32.totalorder %v27, %v53
    %vm99 = vcmp.eq.s32.totalorder %v27, %v57
    %vm100 = vcmp.eq.s32.totalorder %v27, %v61
    %vm101 = vcmp.eq.s32.totalorder %v27, %v65
    %vm102 = vcmp.eq.s32.totalorder %v27, %v69
    %vm103 = vcmp.eq.s32.totalorder %v27, %v73
    %vm104 = vcmp.eq.s32.totalorder %v27, %v77
    %vm105 = vcmp.eq.s32.totalorder %v27, %v81
    %vm106 = vcmp.eq.s32.totalorder %v28, %v53
    %vm107 = vcmp.eq.s32.totalorder %v28, %v57
    %vm108 = vcmp.eq.s32.totalorder %v28, %v61
    %vm109 = vcmp.eq.s32.totalorder %v28, %v65
    %vm110 = vcmp.eq.s32.totalorder %v28, %v69
    %vm111 = vcmp.eq.s32.totalorder %v28, %v73
    %vm112 = vcmp.eq.s32.totalorder %v28, %v77
    %vm113 = vcmp.eq.s32.totalorder %v28, %v81
    %vm114 = vcmp.eq.s32.totalorder %v29, %v53
    %vm115 = vcmp.eq.s32.totalorder %v29, %v57
    %vm116 = vcmp.eq.s32.totalorder %v29, %v61
    %vm117 = vcmp.eq.s32.totalorder %v29, %v65
    %vm118 = vcmp.eq.s32.totalorder %v29, %v69
    %vm119 = vcmp.eq.s32.totalorder %v29, %v73
    %vm120 = vcmp.eq.s32.totalorder %v29, %v77
    %vm121 = vcmp.eq.s32.totalorder %v29, %v81
    %vm122 = vcmp.eq.s32.totalorder %v30, %v53
    %vm123 = vcmp.eq.s32.totalorder %v30, %v57
    %vm124 = vcmp.eq.s32.totalorder %v30, %v61
    %vm125 = vcmp.eq.s32.totalorder %v30, %v65
    %vm126 = vcmp.eq.s32.totalorder %v30, %v69
    %vm127 = vcmp.eq.s32.totalorder %v30, %v73
    %vm128 = vcmp.eq.s32.totalorder %v30, %v77
    %vm129 = vcmp.eq.s32.totalorder %v30, %v81
    %vm130 = vcmp.eq.s32.totalorder %v31, %v53
    %vm131 = vcmp.eq.s32.totalorder %v31, %v57
    %vm132 = vcmp.eq.s32.totalorder %v31, %v61
    %vm133 = vcmp.eq.s32.totalorder %v31, %v65
    %vm134 = vcmp.eq.s32.totalorder %v31, %v69
    %vm135 = vcmp.eq.s32.totalorder %v31, %v73
    %vm136 = vcmp.eq.s32.totalorder %v31, %v77
    %vm137 = vcmp.eq.s32.totalorder %v31, %v81
    %vm138 = vcmp.eq.s32.totalorder %v32, %v53
    %vm139 = vcmp.eq.s32.totalorder %v32, %v57
    %vm140 = vcmp.eq.s32.totalorder %v32, %v61
    %vm141 = vcmp.eq.s32.totalorder %v32, %v65
    %vm142 = vcmp.eq.s32.totalorder %v32, %v69
    %vm143 = vcmp.eq.s32.totalorder %v32, %v73
    %vm144 = vcmp.eq.s32.totalorder %v32, %v77
    %vm145 = vcmp.eq.s32.totalorder %v32, %v81
    %vm146 = vcmp.eq.s32.totalorder %v33, %v53
    %vm147 = vcmp.eq.s32.totalorder %v33, %v57
    %vm148 = vcmp.eq.s32.totalorder %v33, %v61
    %vm149 = vcmp.eq.s32.totalorder %v33, %v65
    %vm150 = vcmp.eq.s32.totalorder %v33, %v69
    %vm151 = vcmp.eq.s32.totalorder %v33, %v73
    %vm152 = vcmp.eq.s32.totalorder %v33, %v77
    %vm153 = vcmp.eq.s32.totalorder %v33, %v81
    %vm154 = vcmp.eq.s32.totalorder %v34, %v53
    %vm155 = vcmp.eq.s32.totalorder %v34, %v57
    %vm156 = vcmp.eq.s32.totalorder %v34, %v61
    %vm157 = vcmp.eq.s32.totalorder %v34, %v65
    %vm158 = vcmp.eq.s32.totalorder %v34, %v69
    %vm159 = vcmp.eq.s32.totalorder %v34, %v73
    %vm160 = vcmp.eq.s32.totalorder %v34, %v77
    %vm161 = vcmp.eq.s32.totalorder %v34, %v81
    %vm162 = vcmp.eq.s32.totalorder %v35, %v53
    %vm163 = vcmp.eq.s32.totalorder %v35, %v57
    %vm164 = vcmp.eq.s32.totalorder %v35, %v61
    %vm165 = vcmp.eq.s32.totalorder %v35, %v65
    %vm166 = vcmp.eq.s32.totalorder %v35, %v69
    %vm167 = vcmp.eq.s32.totalorder %v35, %v73
    %vm168 = vcmp.eq.s32.totalorder %v35, %v77
    %vm169 = vcmp.eq.s32.totalorder %v35, %v81
    %vm170 = vcmp.eq.s32.totalorder %v36, %v53
    %vm171 = vcmp.eq.s32.totalorder %v36, %v57
    %vm172 = vcmp.eq.s32.totalorder %v36, %v61
    %vm173 = vcmp.eq.s32.totalorder %v36, %v65
    %vm174 = vcmp.eq.s32.totalorder %v36, %v69
    %vm175 = vcmp.eq.s32.totalorder %v36, %v73
    %vm176 = vcmp.eq.s32.totalorder %v36, %v77
    %vm177 = vcmp.eq.s32.totalorder %v36, %v81
    %vm178 = vcmp.eq.s32.totalorder %v37, %v53
    %vm179 = vcmp.eq.s32.totalorder %v37, %v57
    %vm180 = vcmp.eq.s32.totalorder %v37, %v61
    %vm181 = vcmp.eq.s32.totalorder %v37, %v65
    %vm182 = vcmp.eq.s32.totalorder %v37, %v69
    %vm183 = vcmp.eq.s32.totalorder %v37, %v73
    %vm184 = vcmp.eq.s32.totalorder %v37, %v77
    %vm185 = vcmp.eq.s32.totalorder %v37, %v81
    %vm186 = vcmp.eq.s32.totalorder %v38, %v53
    %vm187 = vcmp.eq.s32.totalorder %v38, %v57
    %vm188 = vcmp.eq.s32.totalorder %v38, %v61
    %vm189 = vcmp.eq.s32.totalorder %v38, %v65
    %vm190 = vcmp.eq.s32.totalorder %v38, %v69
    %vm191 = vcmp.eq.s32.totalorder %v38, %v73
    %vm192 = vcmp.eq.s32.totalorder %v38, %v77
    %vm193 = vcmp.eq.s32.totalorder %v38, %v81
    %vm194 = vcmp.eq.s32.totalorder %v39, %v53
    %vm195 = vcmp.eq.s32.totalorder %v39, %v57
    %vm196 = vcmp.eq.s32.totalorder %v39, %v61
    %vm197 = vcmp.eq.s32.totalorder %v39, %v65
    %vm198 = vcmp.eq.s32.totalorder %v39, %v69
    %vm199 = vcmp.eq.s32.totalorder %v39, %v73
    %vm200 = vcmp.eq.s32.totalorder %v39, %v77
    %vm201 = vcmp.eq.s32.totalorder %v39, %v81
    %vm202 = vcmp.eq.s32.totalorder %v40, %v53
    %vm203 = vcmp.eq.s32.totalorder %v40, %v57
    %vm204 = vcmp.eq.s32.totalorder %v40, %v61
    %vm205 = vcmp.eq.s32.totalorder %v40, %v65
    %vm206 = vcmp.eq.s32.totalorder %v40, %v69
    %vm207 = vcmp.eq.s32.totalorder %v40, %v73
    %vm208 = vcmp.eq.s32.totalorder %v40, %v77
    %vm209 = vcmp.eq.s32.totalorder %v40, %v81
    %v210 = vsel %vm82, 1, 0
    %v211 = vsel %vm83, 1, 0
    %v212 = vsel %vm84, 1, 0
    %v213 = vsel %vm85, 1, 0
    %v214 = vsel %vm86, 1, 0
    %v215 = vsel %vm87, 1, 0
    %v216 = vsel %vm88, 1, 0
    %v217 = vsel %vm89, 1, 0
    %v218 = vsel %vm90, 1, 0
    %v219 = vsel %vm91, 1, 0
    %v220 = vsel %vm92, 1, 0
    %v221 = vsel %vm93, 1, 0
    %v222 = vsel %vm94, 1, 0
    %v223 = vsel %vm95, 1, 0
    %v224 = vsel %vm96, 1, 0
    %v225 = vsel %vm97, 1, 0
    %v226 = vsel %vm98, 1, 0
    %v227 = vsel %vm99, 1, 0
    %v228 = vsel %vm100, 1, 0
    %v229 = vsel %vm101, 1, 0
    %v230 = vsel %vm102, 1, 0
    %v231 = vsel %vm103, 1, 0
    %v232 = vsel %vm104, 1, 0
    %v233 = vsel %vm105, 1, 0
    %v234 = vsel %vm106, 1, 0
    %v235 = vsel %vm107, 1, 0
    %v236 = vsel %vm108, 1, 0
    %v237 = vsel %vm109, 1, 0
    %v238 = vsel %vm110, 1, 0
    %v239 = vsel %vm111, 1, 0
    %v240 = vsel %vm112, 1, 0
    %v241 = vsel %vm113, 1, 0
    %v242 = vsel %vm114, 1, 0
    %v243 = vsel %vm115, 1, 0
    %v244 = vsel %vm116, 1, 0
    %v245 = vsel %vm117, 1, 0
    %v246 = vsel %vm118, 1, 0
    %v247 = vsel %vm119, 1, 0
    %v248 = vsel %vm120, 1, 0
    %v249 = vsel %vm121, 1, 0
    %v250 = vsel %vm122, 1, 0
    %v251 = vsel %vm123, 1, 0
    %v252 = vsel %vm124, 1, 0
    %v253 = vsel %vm125, 1, 0
    %v254 = vsel %vm126, 1, 0
    %v255 = vsel %vm127, 1, 0
    %v256 = vsel %vm128, 1, 0
    %v257 = vsel %vm129, 1, 0
    %v258 = vsel %vm130, 1, 0
    %v259 = vsel %vm131, 1, 0
    %v260 = vsel %vm132, 1, 0
    %v261 = vsel %vm133, 1, 0
    %v262 = vsel %vm134, 1, 0
    %v263 = vsel %vm135, 1, 0
    %v264 = vsel %vm136, 1, 0
    %v265 = vsel %vm137, 1, 0
    %v266 = vsel %vm138, 1, 0
    %v267 = vsel %vm139, 1, 0
    %v268 = vsel %vm140, 1, 0
    %v269 = vsel %vm141, 1, 0
    %v270 = vsel %vm142, 1, 0
    %v271 = vsel %vm143, 1, 0
    %v272 = vsel %vm144, 1, 0
    %v273 = vsel %vm145, 1, 0
    %v274 = vsel %vm146, 1, 0
    %v275 = vsel %vm147, 1, 0
    %v276 = vsel %vm148, 1, 0
    %v277 = vsel %vm149, 1, 0
    %v278 = vsel %vm150, 1, 0
    %v279 = vsel %vm151, 1, 0
    %v280 = vsel %vm152, 1, 0
    %v281 = vsel %vm153, 1, 0
    %v282 = vsel %vm154, 1, 0
    %v283 = vsel %vm155, 1, 0
    %v284 = vsel %vm156, 1, 0
    %v285 = vsel %vm157, 1, 0
    %v286 = vsel %vm158, 1, 0
    %v287 = vsel %vm159, 1, 0
    %v288 = vsel %vm160, 1, 0
    %v289 = vsel %vm161, 1, 0
    %v290 = vsel %vm162, 1, 0
    %v291 = vsel %vm163, 1, 0
    %v292 = vsel %vm164, 1, 0
    %v293 = vsel %vm165, 1, 0
    %v294 = vsel %vm166, 1, 0
    %v295 = vsel %vm167, 1, 0
    %v296 = vsel %vm168, 1, 0
    %v297 = vsel %vm169, 1, 0
    %v298 = vsel %vm170, 1, 0
    %v299 = vsel %vm171, 1, 0
    %v300 = vsel %vm172, 1, 0
    %v301 = vsel %vm173, 1, 0
    %v302 = vsel %vm174, 1, 0
    %v303 = vsel %vm175, 1, 0
    %v304 = vsel %vm176, 1, 0
    %v305 = vsel %vm177, 1, 0
    %v306 = vsel %vm178, 1, 0
    %v307 = vsel %vm179, 1, 0
    %v308 = vsel %vm180, 1, 0
    %v309 = vsel %vm181, 1, 0
    %v310 = vsel %vm182, 1, 0
    %v311 = vsel %vm183, 1, 0
    %v312 = vsel %vm184, 1, 0
    %v313 = vsel %vm185, 1, 0
    %v314 = vsel %vm186, 1, 0
    %v315 = vsel %vm187, 1, 0
    %v316 = vsel %vm188, 1, 0
    %v317 = vsel %vm189, 1, 0
    %v318 = vsel %vm190, 1, 0
    %v319 = vsel %vm191, 1, 0
    %v320 = vsel %vm192, 1, 0
    %v321 = vsel %vm193, 1, 0
    %v322 = vsel %vm194, 1, 0
    %v323 = vsel %vm195, 1, 0
    %v324 = vsel %vm196, 1, 0
    %v325 = vsel %vm197, 1, 0
    %v326 = vsel %vm198, 1, 0
    %v327 = vsel %vm199, 1, 0
    %v328 = vsel %vm200, 1, 0
    %v329 = vsel %vm201, 1, 0
    %v330 = vsel %vm202, 1, 0
    %v331 = vsel %vm203, 1, 0
    %v332 = vsel %vm204, 1, 0
    %v333 = vsel %vm205, 1, 0
    %v334 = vsel %vm206, 1, 0
    %v335 = vsel %vm207, 1, 0
    %v336 = vsel %vm208, 1, 0
    %v337 = vsel %vm209, 1, 0
    %v338 = vcvt.s32.f32 %v210
    %v339 = vcvt.s32.f32 %v211
    %v340 = vcvt.s32.f32 %v212
    %v341 = vcvt.s32.f32 %v213
    %v342 = vcvt.s32.f32 %v214
    %v343 = vcvt.s32.f32 %v215
    %v344 = vcvt.s32.f32 %v216
    %v345 = vcvt.s32.f32 %v217
    %v346 = vcvt.s32.f32 %v218
    %v347 = vcvt.s32.f32 %v219
    %v348 = vcvt.s32.f32 %v220
    %v349 = vcvt.s32.f32 %v221
    %v350 = vcvt.s32.f32 %v222
    %v351 = vcvt.s32.f32 %v223
    %v352 = vcvt.s32.f32 %v224
    %v353 = vcvt.s32.f32 %v225
    %v354 = vcvt.s32.f32 %v226
    %v355 = vcvt.s32.f32 %v227
    %v356 = vcvt.s32.f32 %v228
    %v357 = vcvt.s32.f32 %v229
    %v358 = vcvt.s32.f32 %v230
    %v359 = vcvt.s32.f32 %v231
    %v360 = vcvt.s32.f32 %v232
    %v361 = vcvt.s32.f32 %v233
    %v362 = vcvt.s32.f32 %v234
    %v363 = vcvt.s32.f32 %v235
    %v364 = vcvt.s32.f32 %v236
    %v365 = vcvt.s32.f32 %v237
    %v366 = vcvt.s32.f32 %v238
    %v367 = vcvt.s32.f32 %v239
    %v368 = vcvt.s32.f32 %v240
    %v369 = vcvt.s32.f32 %v241
    %v370 = vcvt.s32.f32 %v242
    %v371 = vcvt.s32.f32 %v243
    %v372 = vcvt.s32.f32 %v244
    %v373 = vcvt.s32.f32 %v245
    %v374 = vcvt.s32.f32 %v246
    %v375 = vcvt.s32.f32 %v247
    %v376 = vcvt.s32.f32 %v248
    %v377 = vcvt.s32.f32 %v249
    %v378 = vcvt.s32.f32 %v250
    %v379 = vcvt.s32.f32 %v251
    %v380 = vcvt.s32.f32 %v252
    %v381 = vcvt.s32.f32 %v253
    %v382 = vcvt.s32.f32 %v254
    %v383 = vcvt.s32.f32 %v255
    %v384 = vcvt.s32.f32 %v256
    %v385 = vcvt.s32.f32 %v257
    %v386 = vcvt.s32.f32 %v258
    %v387 = vcvt.s32.f32 %v259
    %v388 = vcvt.s32.f32 %v260
    %v389 = vcvt.s32.f32 %v261
    %v390 = vcvt.s32.f32 %v262
    %v391 = vcvt.s32.f32 %v263
    %v392 = vcvt.s32.f32 %v264
    %v393 = vcvt.s32.f32 %v265
    %v394 = vcvt.s32.f32 %v266
    %v395 = vcvt.s32.f32 %v267
    %v396 = vcvt.s32.f32 %v268
    %v397 = vcvt.s32.f32 %v269
    %v398 = vcvt.s32.f32 %v270
    %v399 = vcvt.s32.f32 %v271
    %v400 = vcvt.s32.f32 %v272
    %v401 = vcvt.s32.f32 %v273
    %v402 = vcvt.s32.f32 %v274
    %v403 = vcvt.s32.f32 %v275
    %v404 = vcvt.s32.f32 %v276
    %v405 = vcvt.s32.f32 %v277
    %v406 = vcvt.s32.f32 %v278
    %v407 = vcvt.s32.f32 %v279
    %v408 = vcvt.s32.f32 %v280
    %v409 = vcvt.s32.f32 %v281
    %v410 = vcvt.s32.f32 %v282
    %v411 = vcvt.s32.f32 %v283
    %v412 = vcvt.s32.f32 %v284
    %v413 = vcvt.s32.f32 %v285
    %v414 = vcvt.s32.f32 %v286
    %v415 = vcvt.s32.f32 %v287
    %v416 = vcvt.s32.f32 %v288
    %v417 = vcvt.s32.f32 %v289
    %v418 = vcvt.s32.f32 %v290
    %v419 = vcvt.s32.f32 %v291
    %v420 = vcvt.s32.f32 %v292
    %v421 = vcvt.s32.f32 %v293
    %v422 = vcvt.s32.f32 %v294
    %v423 = vcvt.s32.f32 %v295
    %v424 = vcvt.s32.f32 %v296
    %v425 = vcvt.s32.f32 %v297
    %v426 = vcvt.s32.f32 %v298
    %v427 = vcvt.s32.f32 %v299
    %v428 = vcvt.s32.f32 %v300
    %v429 = vcvt.s32.f32 %v301
    %v430 = vcvt.s32.f32 %v302
    %v431 = vcvt.s32.f32 %v303
    %v432 = vcvt.s32.f32 %v304
    %v433 = vcvt.s32.f32 %v305
    %v434 = vcvt.s32.f32 %v306
    %v435 = vcvt.s32.f32 %v307
    %v436 = vcvt.s32.f32 %v308
    %v437 = vcvt.s32.f32 %v309
    %v438 = vcvt.s32.f32 %v310
    %v439 = vcvt.s32.f32 %v311
    %v440 = vcvt.s32.f32 %v312
    %v441 = vcvt.s32.f32 %v313
    %v442 = vcvt.s32.f32 %v314
    %v443 = vcvt.s32.f32 %v315
    %v444 = vcvt.s32.f32 %v316
    %v445 = vcvt.s32.f32 %v317
    %v446 = vcvt.s32.f32 %v318
    %v447 = vcvt.s32.f32 %v319
    %v448 = vcvt.s32.f32 %v320
    %v449 = vcvt.s32.f32 %v321
    %v450 = vcvt.s32.f32 %v322
    %v451 = vcvt.s32.f32 %v323
    %v452 = vcvt.s32.f32 %v324
    %v453 = vcvt.s32.f32 %v325
    %v454 = vcvt.s32.f32 %v326
    %v455 = vcvt.s32.f32 %v327
    %v456 = vcvt.s32.f32 %v328
    %v457 = vcvt.s32.f32 %v329
    %v458 = vcvt.s32.f32 %v330
    %v459 = vcvt.s32.f32 %v331
    %v460 = vcvt.s32.f32 %v332
    %v461 = vcvt.s32.f32 %v333
    %v462 = vcvt.s32.f32 %v334
    %v463 = vcvt.s32.f32 %v335
    %v464 = vcvt.s32.f32 %v336
    %v465 = vcvt.s32.f32 %v337
    %v466 = vlaneseq
    %v467 = vshrl.u32 %v466, 7
    %v468 = vsub.s32 0, %v467
    %v469 = vrot.slane %v49, %v468
    %v470 = vlaneseq
    %v471 = vshrl.u32 %v470, 7
    %v472 = vsub.s32 1, %v471
    %v473 = vrot.slane %v49, %v472
    %v474 = vlaneseq
    %v475 = vshrl.u32 %v474, 7
    %v476 = vsub.s32 2, %v475
    %v477 = vrot.slane %v49, %v476
    %v478 = vlaneseq
    %v479 = vshrl.u32 %v478, 7
    %v480 = vsub.s32 3, %v479
    %v481 = vrot.slane %v49, %v480
    %v482 = vlaneseq
    %v483 = vshrl.u32 %v482, 7
    %v484 = vsub.s32 4, %v483
    %v485 = vrot.slane %v49, %v484
    %v486 = vlaneseq
    %v487 = vshrl.u32 %v486, 7
    %v488 = vsub.s32 5, %v487
    %v489 = vrot.slane %v49, %v488
    %v490 = vlaneseq
    %v491 = vshrl.u32 %v490, 7
    %v492 = vsub.s32 6, %v491
    %v493 = vrot.slane %v49, %v492
    %v494 = vlaneseq
    %v495 = vshrl.u32 %v494, 7
    %v496 = vsub.s32 7, %v495
    %v497 = vrot.slane %v49, %v496
    %vm498 = vcmp.eq.s32.totalorder %v25, %v469
    %vm499 = vcmp.eq.s32.totalorder %v25, %v473
    %vm500 = vcmp.eq.s32.totalorder %v25, %v477
    %vm501 = vcmp.eq.s32.totalorder %v25, %v481
    %vm502 = vcmp.eq.s32.totalorder %v25, %v485
    %vm503 = vcmp.eq.s32.totalorder %v25, %v489
    %vm504 = vcmp.eq.s32.totalorder %v25, %v493
    %vm505 = vcmp.eq.s32.totalorder %v25, %v497
    %vm506 = vcmp.eq.s32.totalorder %v26, %v469
    %vm507 = vcmp.eq.s32.totalorder %v26, %v473
    %vm508 = vcmp.eq.s32.totalorder %v26, %v477
    %vm509 = vcmp.eq.s32.totalorder %v26, %v481
    %vm510 = vcmp.eq.s32.totalorder %v26, %v485
    %vm511 = vcmp.eq.s32.totalorder %v26, %v489
    %vm512 = vcmp.eq.s32.totalorder %v26, %v493
    %vm513 = vcmp.eq.s32.totalorder %v26, %v497
    %vm514 = vcmp.eq.s32.totalorder %v27, %v469
    %vm515 = vcmp.eq.s32.totalorder %v27, %v473
    %vm516 = vcmp.eq.s32.totalorder %v27, %v477
    %vm517 = vcmp.eq.s32.totalorder %v27, %v481
    %vm518 = vcmp.eq.s32.totalorder %v27, %v485
    %vm519 = vcmp.eq.s32.totalorder %v27, %v489
    %vm520 = vcmp.eq.s32.totalorder %v27, %v493
    %vm521 = vcmp.eq.s32.totalorder %v27, %v497
    %vm522 = vcmp.eq.s32.totalorder %v28, %v469
    %vm523 = vcmp.eq.s32.totalorder %v28, %v473
    %vm524 = vcmp.eq.s32.totalorder %v28, %v477
    %vm525 = vcmp.eq.s32.totalorder %v28, %v481
    %vm526 = vcmp.eq.s32.totalorder %v28, %v485
    %vm527 = vcmp.eq.s32.totalorder %v28, %v489
    %vm528 = vcmp.eq.s32.totalorder %v28, %v493
    %vm529 = vcmp.eq.s32.totalorder %v28, %v497
    %vm530 = vcmp.eq.s32.totalorder %v29, %v469
    %vm531 = vcmp.eq.s32.totalorder %v29, %v473
    %vm532 = vcmp.eq.s32.totalorder %v29, %v477
    %vm533 = vcmp.eq.s32.totalorder %v29, %v481
    %vm534 = vcmp.eq.s32.totalorder %v29, %v485
    %vm535 = vcmp.eq.s32.totalorder %v29, %v489
    %vm536 = vcmp.eq.s32.totalorder %v29, %v493
    %vm537 = vcmp.eq.s32.totalorder %v29, %v497
    %vm538 = vcmp.eq.s32.totalorder %v30, %v469
    %vm539 = vcmp.eq.s32.totalorder %v30, %v473
    %vm540 = vcmp.eq.s32.totalorder %v30, %v477
    %vm541 = vcmp.eq.s32.totalorder %v30, %v481
    %vm542 = vcmp.eq.s32.totalorder %v30, %v485
    %vm543 = vcmp.eq.s32.totalorder %v30, %v489
    %vm544 = vcmp.eq.s32.totalorder %v30, %v493
    %vm545 = vcmp.eq.s32.totalorder %v30, %v497
    %vm546 = vcmp.eq.s32.totalorder %v31, %v469
    %vm547 = vcmp.eq.s32.totalorder %v31, %v473
    %vm548 = vcmp.eq.s32.totalorder %v31, %v477
    %vm549 = vcmp.eq.s32.totalorder %v31, %v481
    %vm550 = vcmp.eq.s32.totalorder %v31, %v485
    %vm551 = vcmp.eq.s32.totalorder %v31, %v489
    %vm552 = vcmp.eq.s32.totalorder %v31, %v493
    %vm553 = vcmp.eq.s32.totalorder %v31, %v497
    %vm554 = vcmp.eq.s32.totalorder %v32, %v469
    %vm555 = vcmp.eq.s32.totalorder %v32, %v473
    %vm556 = vcmp.eq.s32.totalorder %v32, %v477
    %vm557 = vcmp.eq.s32.totalorder %v32, %v481
    %vm558 = vcmp.eq.s32.totalorder %v32, %v485
    %vm559 = vcmp.eq.s32.totalorder %v32, %v489
    %vm560 = vcmp.eq.s32.totalorder %v32, %v493
    %vm561 = vcmp.eq.s32.totalorder %v32, %v497
    %vm562 = vcmp.eq.s32.totalorder %v33, %v469
    %vm563 = vcmp.eq.s32.totalorder %v33, %v473
    %vm564 = vcmp.eq.s32.totalorder %v33, %v477
    %vm565 = vcmp.eq.s32.totalorder %v33, %v481
    %vm566 = vcmp.eq.s32.totalorder %v33, %v485
    %vm567 = vcmp.eq.s32.totalorder %v33, %v489
    %vm568 = vcmp.eq.s32.totalorder %v33, %v493
    %vm569 = vcmp.eq.s32.totalorder %v33, %v497
    %vm570 = vcmp.eq.s32.totalorder %v34, %v469
    %vm571 = vcmp.eq.s32.totalorder %v34, %v473
    %vm572 = vcmp.eq.s32.totalorder %v34, %v477
    %vm573 = vcmp.eq.s32.totalorder %v34, %v481
    %vm574 = vcmp.eq.s32.totalorder %v34, %v485
    %vm575 = vcmp.eq.s32.totalorder %v34, %v489
    %vm576 = vcmp.eq.s32.totalorder %v34, %v493
    %vm577 = vcmp.eq.s32.totalorder %v34, %v497
    %vm578 = vcmp.eq.s32.totalorder %v35, %v469
    %vm579 = vcmp.eq.s32.totalorder %v35, %v473
    %vm580 = vcmp.eq.s32.totalorder %v35, %v477
    %vm581 = vcmp.eq.s32.totalorder %v35, %v481
    %vm582 = vcmp.eq.s32.totalorder %v35, %v485
    %vm583 = vcmp.eq.s32.totalorder %v35, %v489
    %vm584 = vcmp.eq.s32.totalorder %v35, %v493
    %vm585 = vcmp.eq.s32.totalorder %v35, %v497
    %vm586 = vcmp.eq.s32.totalorder %v36, %v469
    %vm587 = vcmp.eq.s32.totalorder %v36, %v473
    %vm588 = vcmp.eq.s32.totalorder %v36, %v477
    %vm589 = vcmp.eq.s32.totalorder %v36, %v481
    %vm590 = vcmp.eq.s32.totalorder %v36, %v485
    %vm591 = vcmp.eq.s32.totalorder %v36, %v489
    %vm592 = vcmp.eq.s32.totalorder %v36, %v493
    %vm593 = vcmp.eq.s32.totalorder %v36, %v497
    %vm594 = vcmp.eq.s32.totalorder %v37, %v469
    %vm595 = vcmp.eq.s32.totalorder %v37, %v473
    %vm596 = vcmp.eq.s32.totalorder %v37, %v477
    %vm597 = vcmp.eq.s32.totalorder %v37, %v481
    %vm598 = vcmp.eq.s32.totalorder %v37, %v485
    %vm599 = vcmp.eq.s32.totalorder %v37, %v489
    %vm600 = vcmp.eq.s32.totalorder %v37, %v493
    %vm601 = vcmp.eq.s32.totalorder %v37, %v497
    %vm602 = vcmp.eq.s32.totalorder %v38, %v469
    %vm603 = vcmp.eq.s32.totalorder %v38, %v473
    %vm604 = vcmp.eq.s32.totalorder %v38, %v477
    %vm605 = vcmp.eq.s32.totalorder %v38, %v481
    %vm606 = vcmp.eq.s32.totalorder %v38, %v485
    %vm607 = vcmp.eq.s32.totalorder %v38, %v489
    %vm608 = vcmp.eq.s32.totalorder %v38, %v493
    %vm609 = vcmp.eq.s32.totalorder %v38, %v497
    %vm610 = vcmp.eq.s32.totalorder %v39, %v469
    %vm611 = vcmp.eq.s32.totalorder %v39, %v473
    %vm612 = vcmp.eq.s32.totalorder %v39, %v477
    %vm613 = vcmp.eq.s32.totalorder %v39, %v481
    %vm614 = vcmp.eq.s32.totalorder %v39, %v485
    %vm615 = vcmp.eq.s32.totalorder %v39, %v489
    %vm616 = vcmp.eq.s32.totalorder %v39, %v493
    %vm617 = vcmp.eq.s32.totalorder %v39, %v497
    %vm618 = vcmp.eq.s32.totalorder %v40, %v469
    %vm619 = vcmp.eq.s32.totalorder %v40, %v473
    %vm620 = vcmp.eq.s32.totalorder %v40, %v477
    %vm621 = vcmp.eq.s32.totalorder %v40, %v481
    %vm622 = vcmp.eq.s32.totalorder %v40, %v485
    %vm623 = vcmp.eq.s32.totalorder %v40, %v489
    %vm624 = vcmp.eq.s32.totalorder %v40, %v493
    %vm625 = vcmp.eq.s32.totalorder %v40, %v497
    %v626 = vsel %vm498, 1, 0
    %v627 = vsel %vm499, 1, 0
    %v628 = vsel %vm500, 1, 0
    %v629 = vsel %vm501, 1, 0
    %v630 = vsel %vm502, 1, 0
    %v631 = vsel %vm503, 1, 0
    %v632 = vsel %vm504, 1, 0
    %v633 = vsel %vm505, 1, 0
    %v634 = vsel %vm506, 1, 0
    %v635 = vsel %vm507, 1, 0
    %v636 = vsel %vm508, 1, 0
    %v637 = vsel %vm509, 1, 0
    %v638 = vsel %vm510, 1, 0
    %v639 = vsel %vm511, 1, 0
    %v640 = vsel %vm512, 1, 0
    %v641 = vsel %vm513, 1, 0
    %v642 = vsel %vm514, 1, 0
    %v643 = vsel %vm515, 1, 0
    %v644 = vsel %vm516, 1, 0
    %v645 = vsel %vm517, 1, 0
    %v646 = vsel %vm518, 1, 0
    %v647 = vsel %vm519, 1, 0
    %v648 = vsel %vm520, 1, 0
    %v649 = vsel %vm521, 1, 0
    %v650 = vsel %vm522, 1, 0
    %v651 = vsel %vm523, 1, 0
    %v652 = vsel %vm524, 1, 0
    %v653 = vsel %vm525, 1, 0
    %v654 = vsel %vm526, 1, 0
    %v655 = vsel %vm527, 1, 0
    %v656 = vsel %vm528, 1, 0
    %v657 = vsel %vm529, 1, 0
    %v658 = vsel %vm530, 1, 0
    %v659 = vsel %vm531, 1, 0
    %v660 = vsel %vm532, 1, 0
    %v661 = vsel %vm533, 1, 0
    %v662 = vsel %vm534, 1, 0
    %v663 = vsel %vm535, 1, 0
    %v664 = vsel %vm536, 1, 0
    %v665 = vsel %vm537, 1, 0
    %v666 = vsel %vm538, 1, 0
    %v667 = vsel %vm539, 1, 0
    %v668 = vsel %vm540, 1, 0
    %v669 = vsel %vm541, 1, 0
    %v670 = vsel %vm542, 1, 0
    %v671 = vsel %vm543, 1, 0
    %v672 = vsel %vm544, 1, 0
    %v673 = vsel %vm545, 1, 0
    %v674 = vsel %vm546, 1, 0
    %v675 = vsel %vm547, 1, 0
    %v676 = vsel %vm548, 1, 0
    %v677 = vsel %vm549, 1, 0
    %v678 = vsel %vm550, 1, 0
    %v679 = vsel %vm551, 1, 0
    %v680 = vsel %vm552, 1, 0
    %v681 = vsel %vm553, 1, 0
    %v682 = vsel %vm554, 1, 0
    %v683 = vsel %vm555, 1, 0
    %v684 = vsel %vm556, 1, 0
    %v685 = vsel %vm557, 1, 0
    %v686 = vsel %vm558, 1, 0
    %v687 = vsel %vm559, 1, 0
    %v688 = vsel %vm560, 1, 0
    %v689 = vsel %vm561, 1, 0
    %v690 = vsel %vm562, 1, 0
    %v691 = vsel %vm563, 1, 0
    %v692 = vsel %vm564, 1, 0
    %v693 = vsel %vm565, 1, 0
    %v694 = vsel %vm566, 1, 0
    %v695 = vsel %vm567, 1, 0
    %v696 = vsel %vm568, 1, 0
    %v697 = vsel %vm569, 1, 0
    %v698 = vsel %vm570, 1, 0
    %v699 = vsel %vm571, 1, 0
    %v700 = vsel %vm572, 1, 0
    %v701 = vsel %vm573, 1, 0
    %v702 = vsel %vm574, 1, 0
    %v703 = vsel %vm575, 1, 0
    %v704 = vsel %vm576, 1, 0
    %v705 = vsel %vm577, 1, 0
    %v706 = vsel %vm578, 1, 0
    %v707 = vsel %vm579, 1, 0
    %v708 = vsel %vm580, 1, 0
    %v709 = vsel %vm581, 1, 0
    %v710 = vsel %vm582, 1, 0
    %v711 = vsel %vm583, 1, 0
    %v712 = vsel %vm584, 1, 0
    %v713 = vsel %vm585, 1, 0
    %v714 = vsel %vm586, 1, 0
    %v715 = vsel %vm587, 1, 0
    %v716 = vsel %vm588, 1, 0
    %v717 = vsel %vm589, 1, 0
    %v718 = vsel %vm590, 1, 0
    %v719 = vsel %vm591, 1, 0
    %v720 = vsel %vm592, 1, 0
    %v721 = vsel %vm593, 1, 0
    %v722 = vsel %vm594, 1, 0
    %v723 = vsel %vm595, 1, 0
    %v724 = vsel %vm596, 1, 0
    %v725 = vsel %vm597, 1, 0
    %v726 = vsel %vm598, 1, 0
    %v727 = vsel %vm599, 1, 0
    %v728 = vsel %vm600, 1, 0
    %v729 = vsel %vm601, 1, 0
    %v730 = vsel %vm602, 1, 0
    %v731 = vsel %vm603, 1, 0
    %v732 = vsel %vm604, 1, 0
    %v733 = vsel %vm605, 1, 0
    %v734 = vsel %vm606, 1, 0
    %v735 = vsel %vm607, 1, 0
    %v736 = vsel %vm608, 1, 0
    %v737 = vsel %vm609, 1, 0
    %v738 = vsel %vm610, 1, 0
    %v739 = vsel %vm611, 1, 0
    %v740 = vsel %vm612, 1, 0
    %v741 = vsel %vm613, 1, 0
    %v742 = vsel %vm614, 1, 0
    %v743 = vsel %vm615, 1, 0
    %v744 = vsel %vm616, 1, 0
    %v745 = vsel %vm617, 1, 0
    %v746 = vsel %vm618, 1, 0
    %v747 = vsel %vm619, 1, 0
    %v748 = vsel %vm620, 1, 0
    %v749 = vsel %vm621, 1, 0
    %v750 = vsel %vm622, 1, 0
    %v751 = vsel %vm623, 1, 0
    %v752 = vsel %vm624, 1, 0
    %v753 = vsel %vm625, 1, 0
    %v754 = vcvt.s32.f32 %v626
    %v755 = vcvt.s32.f32 %v627
    %v756 = vcvt.s32.f32 %v628
    %v757 = vcvt.s32.f32 %v629
    %v758 = vcvt.s32.f32 %v630
    %v759 = vcvt.s32.f32 %v631
    %v760 = vcvt.s32.f32 %v632
    %v761 = vcvt.s32.f32 %v633
    %v762 = vcvt.s32.f32 %v634
    %v763 = vcvt.s32.f32 %v635
    %v764 = vcvt.s32.f32 %v636
    %v765 = vcvt.s32.f32 %v637
    %v766 = vcvt.s32.f32 %v638
    %v767 = vcvt.s32.f32 %v639
    %v768 = vcvt.s32.f32 %v640
    %v769 = vcvt.s32.f32 %v641
    %v770 = vcvt.s32.f32 %v642
    %v771 = vcvt.s32.f32 %v643
    %v772 = vcvt.s32.f32 %v644
    %v773 = vcvt.s32.f32 %v645
    %v774 = vcvt.s32.f32 %v646
    %v775 = vcvt.s32.f32 %v647
    %v776 = vcvt.s32.f32 %v648
    %v777 = vcvt.s32.f32 %v649
    %v778 = vcvt.s32.f32 %v650
    %v779 = vcvt.s32.f32 %v651
    %v780 = vcvt.s32.f32 %v652
    %v781 = vcvt.s32.f32 %v653
    %v782 = vcvt.s32.f32 %v654
    %v783 = vcvt.s32.f32 %v655
    %v784 = vcvt.s32.f32 %v656
    %v785 = vcvt.s32.f32 %v657
    %v786 = vcvt.s32.f32 %v658
    %v787 = vcvt.s32.f32 %v659
    %v788 = vcvt.s32.f32 %v660
    %v789 = vcvt.s32.f32 %v661
    %v790 = vcvt.s32.f32 %v662
    %v791 = vcvt.s32.f32 %v663
    %v792 = vcvt.s32.f32 %v664
    %v793 = vcvt.s32.f32 %v665
    %v794 = vcvt.s32.f32 %v666
    %v795 = vcvt.s32.f32 %v667
    %v796 = vcvt.s32.f32 %v668
    %v797 = vcvt.s32.f32 %v669
    %v798 = vcvt.s32.f32 %v670
    %v799 = vcvt.s32.f32 %v671
    %v800 = vcvt.s32.f32 %v672
    %v801 = vcvt.s32.f32 %v673
    %v802 = vcvt.s32.f32 %v674
    %v803 = vcvt.s32.f32 %v675
    %v804 = vcvt.s32.f32 %v676
    %v805 = vcvt.s32.f32 %v677
    %v806 = vcvt.s32.f32 %v678
    %v807 = vcvt.s32.f32 %v679
    %v808 = vcvt.s32.f32 %v680
    %v809 = vcvt.s32.f32 %v681
    %v810 = vcvt.s32.f32 %v682
    %v811 = vcvt.s32.f32 %v683
    %v812 = vcvt.s32.f32 %v684
    %v813 = vcvt.s32.f32 %v685
    %v814 = vcvt.s32.f32 %v686
    %v815 = vcvt.s32.f32 %v687
    %v816 = vcvt.s32.f32 %v688
    %v817 = vcvt.s32.f32 %v689
    %v818 = vcvt.s32.f32 %v690
    %v819 = vcvt.s32.f32 %v691
    %v820 = vcvt.s32.f32 %v692
    %v821 = vcvt.s32.f32 %v693
    %v822 = vcvt.s32.f32 %v694
    %v823 = vcvt.s32.f32 %v695
    %v824 = vcvt.s32.f32 %v696
    %v825 = vcvt.s32.f32 %v697
    %v826 = vcvt.s32.f32 %v698
    %v827 = vcvt.s32.f32 %v699
    %v828 = vcvt.s32.f32 %v700
    %v829 = vcvt.s32.f32 %v701
    %v830 = vcvt.s32.f32 %v702
    %v831 = vcvt.s32.f32 %v703
    %v832 = vcvt.s32.f32 %v704
    %v833 = vcvt.s32.f32 %v705
    %v834 = vcvt.s32.f32 %v706
    %v835 = vcvt.s32.f32 %v707
    %v836 = vcvt.s32.f32 %v708
    %v837 = vcvt.s32.f32 %v709
    %v838 = vcvt.s32.f32 %v710
    %v839 = vcvt.s32.f32 %v711
    %v840 = vcvt.s32.f32 %v712
    %v841 = vcvt.s32.f32 %v713
    %v842 = vcvt.s32.f32 %v714
    %v843 = vcvt.s32.f32 %v715
    %v844 = vcvt.s32.f32 %v716
    %v845 = vcvt.s32.f32 %v717
    %v846 = vcvt.s32.f32 %v718
    %v847 = vcvt.s32.f32 %v719
    %v848 = vcvt.s32.f32 %v720
    %v849 = vcvt.s32.f32 %v721
    %v850 = vcvt.s32.f32 %v722
    %v851 = vcvt.s32.f32 %v723
    %v852 = vcvt.s32.f32 %v724
    %v853 = vcvt.s32.f32 %v725
    %v854 = vcvt.s32.f32 %v726
    %v855 = vcvt.s32.f32 %v727
    %v856 = vcvt.s32.f32 %v728
    %v857 = vcvt.s32.f32 %v729
    %v858 = vcvt.s32.f32 %v730
    %v859 = vcvt.s32.f32 %v731
    %v860 = vcvt.s32.f32 %v732
    %v861 = vcvt.s32.f32 %v733
    %v862 = vcvt.s32.f32 %v734
    %v863 = vcvt.s32.f32 %v735
    %v864 = vcvt.s32.f32 %v736
    %v865 = vcvt.s32.f32 %v737
    %v866 = vcvt.s32.f32 %v738
    %v867 = vcvt.s32.f32 %v739
    %v868 = vcvt.s32.f32 %v740
    %v869 = vcvt.s32.f32 %v741
    %v870 = vcvt.s32.f32 %v742
    %v871 = vcvt.s32.f32 %v743
    %v872 = vcvt.s32.f32 %v744
    %v873 = vcvt.s32.f32 %v745
    %v874 = vcvt.s32.f32 %v746
    %v875 = vcvt.s32.f32 %v747
    %v876 = vcvt.s32.f32 %v748
    %v877 = vcvt.s32.f32 %v749
    %v878 = vcvt.s32.f32 %v750
    %v879 = vcvt.s32.f32 %v751
    %v880 = vcvt.s32.f32 %v752
    %v881 = vcvt.s32.f32 %v753
    %v882 = vsub.f32 %v338, %v754
    %v883 = vsub.f32 %v339, %v755
    %v884 = vsub.f32 %v340, %v756
    %v885 = vsub.f32 %v341, %v757
    %v886 = vsub.f32 %v342, %v758
    %v887 = vsub.f32 %v343, %v759
    %v888 = vsub.f32 %v344, %v760
    %v889 = vsub.f32 %v345, %v761
    %v890 = vsub.f32 %v346, %v762
    %v891 = vsub.f32 %v347, %v763
    %v892 = vsub.f32 %v348, %v764
    %v893 = vsub.f32 %v349, %v765
    %v894 = vsub.f32 %v350, %v766
    %v895 = vsub.f32 %v351, %v767
    %v896 = vsub.f32 %v352, %v768
    %v897 = vsub.f32 %v353, %v769
    %v898 = vsub.f32 %v354, %v770
    %v899 = vsub.f32 %v355, %v771
    %v900 = vsub.f32 %v356, %v772
    %v901 = vsub.f32 %v357, %v773
    %v902 = vsub.f32 %v358, %v774
    %v903 = vsub.f32 %v359, %v775
    %v904 = vsub.f32 %v360, %v776
    %v905 = vsub.f32 %v361, %v777
    %v906 = vsub.f32 %v362, %v778
    %v907 = vsub.f32 %v363, %v779
    %v908 = vsub.f32 %v364, %v780
    %v909 = vsub.f32 %v365, %v781
    %v910 = vsub.f32 %v366, %v782
    %v911 = vsub.f32 %v367, %v783
    %v912 = vsub.f32 %v368, %v784
    %v913 = vsub.f32 %v369, %v785
    %v914 = vsub.f32 %v370, %v786
    %v915 = vsub.f32 %v371, %v787
    %v916 = vsub.f32 %v372, %v788
    %v917 = vsub.f32 %v373, %v789
    %v918 = vsub.f32 %v374, %v790
    %v919 = vsub.f32 %v375, %v791
    %v920 = vsub.f32 %v376, %v792
    %v921 = vsub.f32 %v377, %v793
    %v922 = vsub.f32 %v378, %v794
    %v923 = vsub.f32 %v379, %v795
    %v924 = vsub.f32 %v380, %v796
    %v925 = vsub.f32 %v381, %v797
    %v926 = vsub.f32 %v382, %v798
    %v927 = vsub.f32 %v383, %v799
    %v928 = vsub.f32 %v384, %v800
    %v929 = vsub.f32 %v385, %v801
    %v930 = vsub.f32 %v386, %v802
    %v931 = vsub.f32 %v387, %v803
    %v932 = vsub.f32 %v388, %v804
    %v933 = vsub.f32 %v389, %v805
    %v934 = vsub.f32 %v390, %v806
    %v935 = vsub.f32 %v391, %v807
    %v936 = vsub.f32 %v392, %v808
    %v937 = vsub.f32 %v393, %v809
    %v938 = vsub.f32 %v394, %v810
    %v939 = vsub.f32 %v395, %v811
    %v940 = vsub.f32 %v396, %v812
    %v941 = vsub.f32 %v397, %v813
    %v942 = vsub.f32 %v398, %v814
    %v943 = vsub.f32 %v399, %v815
    %v944 = vsub.f32 %v400, %v816
    %v945 = vsub.f32 %v401, %v817
    %v946 = vsub.f32 %v402, %v818
    %v947 = vsub.f32 %v403, %v819
    %v948 = vsub.f32 %v404, %v820
    %v949 = vsub.f32 %v405, %v821
    %v950 = vsub.f32 %v406, %v822
    %v951 = vsub.f32 %v407, %v823
    %v952 = vsub.f32 %v408, %v824
    %v953 = vsub.f32 %v409, %v825
    %v954 = vsub.f32 %v410, %v826
    %v955 = vsub.f32 %v411, %v827
    %v956 = vsub.f32 %v412, %v828
    %v957 = vsub.f32 %v413, %v829
    %v958 = vsub.f32 %v414, %v830
    %v959 = vsub.f32 %v415, %v831
    %v960 = vsub.f32 %v416, %v832
    %v961 = vsub.f32 %v417, %v833
    %v962 = vsub.f32 %v418, %v834
    %v963 = vsub.f32 %v419, %v835
    %v964 = vsub.f32 %v420, %v836
    %v965 = vsub.f32 %v421, %v837
    %v966 = vsub.f32 %v422, %v838
    %v967 = vsub.f32 %v423, %v839
    %v968 = vsub.f32 %v424, %v840
    %v969 = vsub.f32 %v425, %v841
    %v970 = vsub.f32 %v426, %v842
    %v971 = vsub.f32 %v427, %v843
    %v972 = vsub.f32 %v428, %v844
    %v973 = vsub.f32 %v429, %v845
    %v974 = vsub.f32 %v430, %v846
    %v975 = vsub.f32 %v431, %v847
    %v976 = vsub.f32 %v432, %v848
    %v977 = vsub.f32 %v433, %v849
    %v978 = vsub.f32 %v434, %v850
    %v979 = vsub.f32 %v435, %v851
    %v980 = vsub.f32 %v436, %v852
    %v981 = vsub.f32 %v437, %v853
    %v982 = vsub.f32 %v438, %v854
    %v983 = vsub.f32 %v439, %v855
    %v984 = vsub.f32 %v440, %v856
    %v985 = vsub.f32 %v441, %v857
    %v986 = vsub.f32 %v442, %v858
    %v987 = vsub.f32 %v443, %v859
    %v988 = vsub.f32 %v444, %v860
    %v989 = vsub.f32 %v445, %v861
    %v990 = vsub.f32 %v446, %v862
    %v991 = vsub.f32 %v447, %v863
    %v992 = vsub.f32 %v448, %v864
    %v993 = vsub.f32 %v449, %v865
    %v994 = vsub.f32 %v450, %v866
    %v995 = vsub.f32 %v451, %v867
    %v996 = vsub.f32 %v452, %v868
    %v997 = vsub.f32 %v453, %v869
    %v998 = vsub.f32 %v454, %v870
    %v999 = vsub.f32 %v455, %v871
    %v1000 = vsub.f32 %v456, %v872
    %v1001 = vsub.f32 %v457, %v873
    %v1002 = vsub.f32 %v458, %v874
    %v1003 = vsub.f32 %v459, %v875
    %v1004 = vsub.f32 %v460, %v876
    %v1005 = vsub.f32 %v461, %v877
    %v1006 = vsub.f32 %v462, %v878
    %v1007 = vsub.f32 %v463, %v879
    %v1008 = vsub.f32 %v464, %v880
    %v1009 = vsub.f32 %v465, %v881
    %1010 = vmatprep.subr.mxu0 %v1003
    %1011 = vmatpush1.msra.mxu0 %v1002
    %1012 = vmatprep.subr.mxu0 %v995
    %1013 = vmatpush1.msra.mxu0 %v994
    %1014 = vmatprep.subr.mxu0 %v987
    %1015 = vmatpush1.msra.mxu0 %v986
    %1016 = vmatprep.subr.mxu0 %v979
    %1017 = vmatpush1.msra.mxu0 %v978
    %1018 = vmatprep.subr.mxu0 %v971
    %1019 = vmatpush1.msra.mxu0 %v970
    %1020 = vmatprep.subr.mxu0 %v963
    %1021 = vmatpush1.msra.mxu0 %v962
    %1022 = vmatprep.subr.mxu0 %v955
    %1023 = vmatpush1.msra.mxu0 %v954
    %1024 = vmatprep.subr.mxu0 %v947
    %1025 = vmatpush1.msra.mxu0 %v946
    %1026 = vmatprep.subr.mxu0 %v939
    %1027 = vmatpush1.msra.mxu0 %v938
    %1028 = vmatprep.subr.mxu0 %v931
    %1029 = vmatpush1.msra.mxu0 %v930
    %1030 = vmatprep.subr.mxu0 %v923
    %1031 = vmatpush1.msra.mxu0 %v922
    %1032 = vmatprep.subr.mxu0 %v915
    %1033 = vmatpush1.msra.mxu0 %v914
    %1034 = vmatprep.subr.mxu0 %v907
    %1035 = vmatpush1.msra.mxu0 %v906
    %1036 = vmatprep.subr.mxu0 %v899
    %1037 = vmatpush1.msra.mxu0 %v898
    %1038 = vmatprep.subr.mxu0 %v891
    %1039 = vmatpush1.msra.mxu0 %v890
    %1040 = vmatprep.subr.mxu0 %v883
    %1041 = vmatpush1.msra.mxu0 %v882
    %1042 = vmatprep.subr.mxu0 0.0
    %1043 = vmatpush2.msra.mxu0 0.0
    %1044 = vmatprep.subr.mxu0 0.0
    %1045 = vmatpush2.msra.mxu0 0.0
    %1046 = vmatprep.subr.mxu0 0.0
    %1047 = vmatpush2.msra.mxu0 0.0
    %1048 = vmatprep.subr.mxu0 0.0
    %1049 = vmatpush2.msra.mxu0 0.0
    %1050 = vmatprep.subr.mxu0 0.0
    %1051 = vmatpush2.msra.mxu0 0.0
    %1052 = vmatprep.subr.mxu0 0.0
    %1053 = vmatpush2.msra.mxu0 0.0
    %1054 = vmatprep.subr.mxu0 0.0
    %1055 = vmatpush2.msra.mxu0 0.0
    %1056 = vmatprep.subr.mxu0 0.0
    %1057 = vmatpush2.msra.mxu0 0.0
    %1058 = vmatprep.subr.mxu0 0.0
    %1059 = vmatpush2.msra.mxu0 0.0
    %1060 = vmatprep.subr.mxu0 0.0
    %1061 = vmatpush2.msra.mxu0 0.0
    %1062 = vmatprep.subr.mxu0 0.0
    %1063 = vmatpush2.msra.mxu0 0.0
    %1064 = vmatprep.subr.mxu0 0.0
    %1065 = vmatpush2.msra.mxu0 0.0
    %1066 = vmatprep.subr.mxu0 0.0
    %1067 = vmatpush2.msra.mxu0 0.0
    %1068 = vmatprep.subr.mxu0 0.0
    %1069 = vmatpush2.msra.mxu0 0.0
    %1070 = vmatprep.subr.mxu0 0.0
    %1071 = vmatpush2.msra.mxu0 0.0
    %1072 = vmatprep.subr.mxu0 0.0
    %1073 = vmatpush2.msra.mxu0 0.0
    %1074 = vmatprep.mubr.f32.mxu0 0.0
    %1075 = vmatmul.mubr.f32.gmra.mxu0 %v47
    %v1076 = vpop.f32.mrf.mxu0
    %v1077 = vadd.f32 0.0, %v1076
    %v1078 = vpop.f32.mrf.mxu0
    %v1079 = vadd.f32 0.0, %v1078
    %1080 = vdwg.mxu0
    %1081 = vmatprep.subr.mxu0 %v1005
    %1082 = vmatpush1.msra.mxu0 %v1004
    %1083 = vmatprep.subr.mxu0 %v997
    %1084 = vmatpush1.msra.mxu0 %v996
    %1085 = vmatprep.subr.mxu0 %v989
    %1086 = vmatpush1.msra.mxu0 %v988
    %1087 = vmatprep.subr.mxu0 %v981
    %1088 = vmatpush1.msra.mxu0 %v980
    %1089 = vmatprep.subr.mxu0 %v973
    %1090 = vmatpush1.msra.mxu0 %v972
    %1091 = vmatprep.subr.mxu0 %v965
    %1092 = vmatpush1.msra.mxu0 %v964
    %1093 = vmatprep.subr.mxu0 %v957
    %1094 = vmatpush1.msra.mxu0 %v956
    %1095 = vmatprep.subr.mxu0 %v949
    %1096 = vmatpush1.msra.mxu0 %v948
    %1097 = vmatprep.subr.mxu0 %v941
    %1098 = vmatpush1.msra.mxu0 %v940
    %1099 = vmatprep.subr.mxu0 %v933
    %1100 = vmatpush1.msra.mxu0 %v932
    %1101 = vmatprep.subr.mxu0 %v925
    %1102 = vmatpush1.msra.mxu0 %v924
    %1103 = vmatprep.subr.mxu0 %v917
    %1104 = vmatpush1.msra.mxu0 %v916
    %1105 = vmatprep.subr.mxu0 %v909
    %1106 = vmatpush1.msra.mxu0 %v908
    %1107 = vmatprep.subr.mxu0 %v901
    %1108 = vmatpush1.msra.mxu0 %v900
    %1109 = vmatprep.subr.mxu0 %v893
    %1110 = vmatpush1.msra.mxu0 %v892
    %1111 = vmatprep.subr.mxu0 %v885
    %1112 = vmatpush1.msra.mxu0 %v884
    %1113 = vmatprep.subr.mxu0 0.0
    %1114 = vmatpush2.msra.mxu0 0.0
    %1115 = vmatprep.subr.mxu0 0.0
    %1116 = vmatpush2.msra.mxu0 0.0
    %1117 = vmatprep.subr.mxu0 0.0
    %1118 = vmatpush2.msra.mxu0 0.0
    %1119 = vmatprep.subr.mxu0 0.0
    %1120 = vmatpush2.msra.mxu0 0.0
    %1121 = vmatprep.subr.mxu0 0.0
    %1122 = vmatpush2.msra.mxu0 0.0
    %1123 = vmatprep.subr.mxu0 0.0
    %1124 = vmatpush2.msra.mxu0 0.0
    %1125 = vmatprep.subr.mxu0 0.0
    %1126 = vmatpush2.msra.mxu0 0.0
    %1127 = vmatprep.subr.mxu0 0.0
    %1128 = vmatpush2.msra.mxu0 0.0
    %1129 = vmatprep.subr.mxu0 0.0
    %1130 = vmatpush2.msra.mxu0 0.0
    %1131 = vmatprep.subr.mxu0 0.0
    %1132 = vmatpush2.msra.mxu0 0.0
    %1133 = vmatprep.subr.mxu0 0.0
    %1134 = vmatpush2.msra.mxu0 0.0
    %1135 = vmatprep.subr.mxu0 0.0
    %1136 = vmatpush2.msra.mxu0 0.0
    %1137 = vmatprep.subr.mxu0 0.0
    %1138 = vmatpush2.msra.mxu0 0.0
    %1139 = vmatprep.subr.mxu0 0.0
    %1140 = vmatpush2.msra.mxu0 0.0
    %1141 = vmatprep.subr.mxu0 0.0
    %1142 = vmatpush2.msra.mxu0 0.0
    %1143 = vmatprep.subr.mxu0 0.0
    %1144 = vmatpush2.msra.mxu0 0.0
    %1145 = vmatprep.mubr.f32.mxu0 0.0
    %1146 = vmatmul.mubr.f32.gmra.mxu0 %v47
    %v1147 = vpop.f32.mrf.mxu0
    %v1148 = vadd.f32 0.0, %v1147
    %v1149 = vpop.f32.mrf.mxu0
    %v1150 = vadd.f32 0.0, %v1149
    %1151 = vdwg.mxu0
    %1152 = vmatprep.subr.mxu0 %v1007
    %1153 = vmatpush1.msra.mxu0 %v1006
    %1154 = vmatprep.subr.mxu0 %v999
    %1155 = vmatpush1.msra.mxu0 %v998
    %1156 = vmatprep.subr.mxu0 %v991
    %1157 = vmatpush1.msra.mxu0 %v990
    %1158 = vmatprep.subr.mxu0 %v983
    %1159 = vmatpush1.msra.mxu0 %v982
    %1160 = vmatprep.subr.mxu0 %v975
    %1161 = vmatpush1.msra.mxu0 %v974
    %1162 = vmatprep.subr.mxu0 %v967
    %1163 = vmatpush1.msra.mxu0 %v966
    %1164 = vmatprep.subr.mxu0 %v959
    %1165 = vmatpush1.msra.mxu0 %v958
    %1166 = vmatprep.subr.mxu0 %v951
    %1167 = vmatpush1.msra.mxu0 %v950
    %1168 = vmatprep.subr.mxu0 %v943
    %1169 = vmatpush1.msra.mxu0 %v942
    %1170 = vmatprep.subr.mxu0 %v935
    %1171 = vmatpush1.msra.mxu0 %v934
    %1172 = vmatprep.subr.mxu0 %v927
    %1173 = vmatpush1.msra.mxu0 %v926
    %1174 = vmatprep.subr.mxu0 %v919
    %1175 = vmatpush1.msra.mxu0 %v918
    %1176 = vmatprep.subr.mxu0 %v911
    %1177 = vmatpush1.msra.mxu0 %v910
    %1178 = vmatprep.subr.mxu0 %v903
    %1179 = vmatpush1.msra.mxu0 %v902
    %1180 = vmatprep.subr.mxu0 %v895
    %1181 = vmatpush1.msra.mxu0 %v894
    %1182 = vmatprep.subr.mxu0 %v887
    %1183 = vmatpush1.msra.mxu0 %v886
    %1184 = vmatprep.subr.mxu0 0.0
    %1185 = vmatpush2.msra.mxu0 0.0
    %1186 = vmatprep.subr.mxu0 0.0
    %1187 = vmatpush2.msra.mxu0 0.0
    %1188 = vmatprep.subr.mxu0 0.0
    %1189 = vmatpush2.msra.mxu0 0.0
    %1190 = vmatprep.subr.mxu0 0.0
    %1191 = vmatpush2.msra.mxu0 0.0
    %1192 = vmatprep.subr.mxu0 0.0
    %1193 = vmatpush2.msra.mxu0 0.0
    %1194 = vmatprep.subr.mxu0 0.0
    %1195 = vmatpush2.msra.mxu0 0.0
    %1196 = vmatprep.subr.mxu0 0.0
    %1197 = vmatpush2.msra.mxu0 0.0
    %1198 = vmatprep.subr.mxu0 0.0
    %1199 = vmatpush2.msra.mxu0 0.0
    %1200 = vmatprep.subr.mxu0 0.0
    %1201 = vmatpush2.msra.mxu0 0.0
    %1202 = vmatprep.subr.mxu0 0.0
    %1203 = vmatpush2.msra.mxu0 0.0
    %1204 = vmatprep.subr.mxu0 0.0
    %1205 = vmatpush2.msra.mxu0 0.0
    %1206 = vmatprep.subr.mxu0 0.0
    %1207 = vmatpush2.msra.mxu0 0.0
    %1208 = vmatprep.subr.mxu0 0.0
    %1209 = vmatpush2.msra.mxu0 0.0
    %1210 = vmatprep.subr.mxu0 0.0
    %1211 = vmatpush2.msra.mxu0 0.0
    %1212 = vmatprep.subr.mxu0 0.0
    %1213 = vmatpush2.msra.mxu0 0.0
    %1214 = vmatprep.subr.mxu0 0.0
    %1215 = vmatpush2.msra.mxu0 0.0
    %1216 = vmatprep.mubr.f32.mxu0 0.0
    %1217 = vmatmul.mubr.f32.gmra.mxu0 %v47
    %v1218 = vpop.f32.mrf.mxu0
    %v1219 = vadd.f32 0.0, %v1218
    %v1220 = vpop.f32.mrf.mxu0
    %v1221 = vadd.f32 0.0, %v1220
    %1222 = vdwg.mxu0
    %1223 = vmatprep.subr.mxu0 %v1009
    %1224 = vmatpush1.msra.mxu0 %v1008
    %1225 = vmatprep.subr.mxu0 %v1001
    %1226 = vmatpush1.msra.mxu0 %v1000
    %1227 = vmatprep.subr.mxu0 %v993
    %1228 = vmatpush1.msra.mxu0 %v992
    %1229 = vmatprep.subr.mxu0 %v985
    %1230 = vmatpush1.msra.mxu0 %v984
    %1231 = vmatprep.subr.mxu0 %v977
    %1232 = vmatpush1.msra.mxu0 %v976
    %1233 = vmatprep.subr.mxu0 %v969
    %1234 = vmatpush1.msra.mxu0 %v968
    %1235 = vmatprep.subr.mxu0 %v961
    %1236 = vmatpush1.msra.mxu0 %v960
    %1237 = vmatprep.subr.mxu0 %v953
    %1238 = vmatpush1.msra.mxu0 %v952
    %1239 = vmatprep.subr.mxu0 %v945
    %1240 = vmatpush1.msra.mxu0 %v944
    %1241 = vmatprep.subr.mxu0 %v937
    %1242 = vmatpush1.msra.mxu0 %v936
    %1243 = vmatprep.subr.mxu0 %v929
    %1244 = vmatpush1.msra.mxu0 %v928
    %1245 = vmatprep.subr.mxu0 %v921
    %1246 = vmatpush1.msra.mxu0 %v920
    %1247 = vmatprep.subr.mxu0 %v913
    %1248 = vmatpush1.msra.mxu0 %v912
    %1249 = vmatprep.subr.mxu0 %v905
    %1250 = vmatpush1.msra.mxu0 %v904
    %1251 = vmatprep.subr.mxu0 %v897
    %1252 = vmatpush1.msra.mxu0 %v896
    %1253 = vmatprep.subr.mxu0 %v889
    %1254 = vmatpush1.msra.mxu0 %v888
    %1255 = vmatprep.subr.mxu0 0.0
    %1256 = vmatpush2.msra.mxu0 0.0
    %1257 = vmatprep.subr.mxu0 0.0
    %1258 = vmatpush2.msra.mxu0 0.0
    %1259 = vmatprep.subr.mxu0 0.0
    %1260 = vmatpush2.msra.mxu0 0.0
    %1261 = vmatprep.subr.mxu0 0.0
    %1262 = vmatpush2.msra.mxu0 0.0
    %1263 = vmatprep.subr.mxu0 0.0
    %1264 = vmatpush2.msra.mxu0 0.0
    %1265 = vmatprep.subr.mxu0 0.0
    %1266 = vmatpush2.msra.mxu0 0.0
    %1267 = vmatprep.subr.mxu0 0.0
    %1268 = vmatpush2.msra.mxu0 0.0
    %1269 = vmatprep.subr.mxu0 0.0
    %1270 = vmatpush2.msra.mxu0 0.0
    %1271 = vmatprep.subr.mxu0 0.0
    %1272 = vmatpush2.msra.mxu0 0.0
    %1273 = vmatprep.subr.mxu0 0.0
    %1274 = vmatpush2.msra.mxu0 0.0
    %1275 = vmatprep.subr.mxu0 0.0
    %1276 = vmatpush2.msra.mxu0 0.0
    %1277 = vmatprep.subr.mxu0 0.0
    %1278 = vmatpush2.msra.mxu0 0.0
    %1279 = vmatprep.subr.mxu0 0.0
    %1280 = vmatpush2.msra.mxu0 0.0
    %1281 = vmatprep.subr.mxu0 0.0
    %1282 = vmatpush2.msra.mxu0 0.0
    %1283 = vmatprep.subr.mxu0 0.0
    %1284 = vmatpush2.msra.mxu0 0.0
    %1285 = vmatprep.subr.mxu0 0.0
    %1286 = vmatpush2.msra.mxu0 0.0
    %1287 = vmatprep.mubr.f32.mxu0 0.0
    %1288 = vmatmul.mubr.f32.gmra.mxu0 %v47
    %v1289 = vpop.f32.mrf.mxu0
    %v1290 = vadd.f32 0.0, %v1289
    %v1291 = vpop.f32.mrf.mxu0
    %v1292 = vadd.f32 0.0, %v1291
    %1293 = vdwg.mxu0
    %v1294 = vmax.f32 %v1077, %v1079
    %v1295 = vmax.f32 %v1294, %v1148
    %v1296 = vmax.f32 %v1295, %v1150
    %v1297 = vmax.f32 %v1296, %v1219
    %v1298 = vmax.f32 %v1297, %v1221
    %v1299 = vmax.f32 %v1298, %v1290
    %v1300 = vmax.f32 %v1299, %v1292
    %vm1301 = vcmask 64512
    %v1303 = vsel %vm1301, %v43, 0
    %v1306 = vsel %vm1301, %v44, 0
    %1308 = vmatprep.subr.mxu0 0.0
    %1309 = vmatpush1.msra.mxu0 0.0
    %1310 = vmatprep.subr.mxu0 0.0
    %1311 = vmatpush1.msra.mxu0 0.0
    %1312 = vmatprep.subr.mxu0 0.0
    %1313 = vmatpush1.msra.mxu0 0.0
    %1314 = vmatprep.subr.mxu0 0.0
    %1315 = vmatpush1.msra.mxu0 0.0
    %1316 = vmatprep.subr.mxu0 0.0
    %1317 = vmatpush1.msra.mxu0 0.0
    %1318 = vmatprep.subr.mxu0 0.0
    %1319 = vmatpush1.msra.mxu0 0.0
    %1320 = vmatprep.subr.mxu0 0.0
    %1321 = vmatpush1.msra.mxu0 0.0
    %1322 = vmatprep.subr.mxu0 0.0
    %1323 = vmatpush1.msra.mxu0 0.0
    %1324 = vmatprep.subr.mxu0 0.0
    %1325 = vmatpush1.msra.mxu0 0.0
    %1326 = vmatprep.subr.mxu0 0.0
    %1327 = vmatpush1.msra.mxu0 0.0
    %1328 = vmatprep.subr.mxu0 0.0
    %1329 = vmatpush1.msra.mxu0 0.0
    %1330 = vmatprep.subr.mxu0 0.0
    %1331 = vmatpush1.msra.mxu0 0.0
    %1332 = vmatprep.subr.mxu0 0.0
    %1333 = vmatpush1.msra.mxu0 0.0
    %1334 = vmatprep.subr.mxu0 0.0
    %1335 = vmatpush1.msra.mxu0 0.0
    %1336 = vmatprep.subr.mxu0 0.0
    %1337 = vmatpush1.msra.mxu0 0.0
    %1338 = vmatprep.subr.mxu0 0.0
    %1339 = vmatpush1.msra.mxu0 %v1300
    %1340 = vmatprep.subr.mxu0 0.0
    %1341 = vmatpush2.msra.mxu0 0.0
    %1342 = vmatprep.subr.mxu0 0.0
    %1343 = vmatpush2.msra.mxu0 0.0
    %1344 = vmatprep.subr.mxu0 0.0
    %1345 = vmatpush2.msra.mxu0 0.0
    %1346 = vmatprep.subr.mxu0 0.0
    %1347 = vmatpush2.msra.mxu0 0.0
    %1348 = vmatprep.subr.mxu0 0.0
    %1349 = vmatpush2.msra.mxu0 0.0
    %1350 = vmatprep.subr.mxu0 0.0
    %1351 = vmatpush2.msra.mxu0 0.0
    %1352 = vmatprep.subr.mxu0 0.0
    %1353 = vmatpush2.msra.mxu0 0.0
    %1354 = vmatprep.subr.mxu0 0.0
    %1355 = vmatpush2.msra.mxu0 0.0
    %1356 = vmatprep.subr.mxu0 0.0
    %1357 = vmatpush2.msra.mxu0 0.0
    %1358 = vmatprep.subr.mxu0 0.0
    %1359 = vmatpush2.msra.mxu0 0.0
    %1360 = vmatprep.subr.mxu0 0.0
    %1361 = vmatpush2.msra.mxu0 0.0
    %1362 = vmatprep.subr.mxu0 0.0
    %1363 = vmatpush2.msra.mxu0 0.0
    %1364 = vmatprep.subr.mxu0 0.0
    %1365 = vmatpush2.msra.mxu0 0.0
    %1366 = vmatprep.subr.mxu0 0.0
    %1367 = vmatpush2.msra.mxu0 0.0
    %1368 = vmatprep.subr.mxu0 0.0
    %1369 = vmatpush2.msra.mxu0 0.0
    %1370 = vmatprep.subr.mxu0 0.0
    %1371 = vmatpush2.msra.mxu0 0.0
    %1372 = vmatprep.mubr.f32.mxu0 0.0
    %1373 = vmatmul.mubr.f32.gmra.mxu0 %v1303
    %v1374 = vpop.f32.mrf.mxu0
    %v1375 = vadd.f32 0.0, %v1374
    %v1376 = vpop.f32.mrf.mxu0
    %1377 = vmatprep.mubr.f32.mxu0 0.0
    %1378 = vmatmul.mubr.f32.gmra.mxu0 %v1306
    %v1379 = vpop.f32.mrf.mxu0
    %v1380 = vadd.f32 0.0, %v1379
    %v1381 = vpop.f32.mrf.mxu0
    %1382 = vdwg.mxu0
    %v1384 = vsel %vm1301, %v41, 0
    %v1387 = vsel %vm1301, %v42, 0
    %1389 = vmatprep.subr.mxu0 0.0
    %1390 = vmatpush1.msra.mxu0 0.0
    %1391 = vmatprep.subr.mxu0 0.0
    %1392 = vmatpush1.msra.mxu0 0.0
    %1393 = vmatprep.subr.mxu0 0.0
    %1394 = vmatpush1.msra.mxu0 0.0
    %1395 = vmatprep.subr.mxu0 0.0
    %1396 = vmatpush1.msra.mxu0 0.0
    %1397 = vmatprep.subr.mxu0 0.0
    %1398 = vmatpush1.msra.mxu0 0.0
    %1399 = vmatprep.subr.mxu0 0.0
    %1400 = vmatpush1.msra.mxu0 0.0
    %1401 = vmatprep.subr.mxu0 0.0
    %1402 = vmatpush1.msra.mxu0 0.0
    %1403 = vmatprep.subr.mxu0 0.0
    %1404 = vmatpush1.msra.mxu0 0.0
    %1405 = vmatprep.subr.mxu0 0.0
    %1406 = vmatpush1.msra.mxu0 0.0
    %1407 = vmatprep.subr.mxu0 0.0
    %1408 = vmatpush1.msra.mxu0 0.0
    %1409 = vmatprep.subr.mxu0 0.0
    %1410 = vmatpush1.msra.mxu0 0.0
    %1411 = vmatprep.subr.mxu0 0.0
    %1412 = vmatpush1.msra.mxu0 0.0
    %1413 = vmatprep.subr.mxu0 0.0
    %1414 = vmatpush1.msra.mxu0 0.0
    %1415 = vmatprep.subr.mxu0 0.0
    %1416 = vmatpush1.msra.mxu0 0.0
    %1417 = vmatprep.subr.mxu0 0.0
    %1418 = vmatpush1.msra.mxu0 0.0
    %1419 = vmatprep.subr.mxu0 0.0
    %1420 = vmatpush1.msra.mxu0 %v47
    %1421 = vmatprep.subr.mxu0 0.0
    %1422 = vmatpush2.msra.mxu0 0.0
    %1423 = vmatprep.subr.mxu0 0.0
    %1424 = vmatpush2.msra.mxu0 0.0
    %1425 = vmatprep.subr.mxu0 0.0
    %1426 = vmatpush2.msra.mxu0 0.0
    %1427 = vmatprep.subr.mxu0 0.0
    %1428 = vmatpush2.msra.mxu0 0.0
    %1429 = vmatprep.subr.mxu0 0.0
    %1430 = vmatpush2.msra.mxu0 0.0
    %1431 = vmatprep.subr.mxu0 0.0
    %1432 = vmatpush2.msra.mxu0 0.0
    %1433 = vmatprep.subr.mxu0 0.0
    %1434 = vmatpush2.msra.mxu0 0.0
    %1435 = vmatprep.subr.mxu0 0.0
    %1436 = vmatpush2.msra.mxu0 0.0
    %1437 = vmatprep.subr.mxu0 0.0
    %1438 = vmatpush2.msra.mxu0 0.0
    %1439 = vmatprep.subr.mxu0 0.0
    %1440 = vmatpush2.msra.mxu0 0.0
    %1441 = vmatprep.subr.mxu0 0.0
    %1442 = vmatpush2.msra.mxu0 0.0
    %1443 = vmatprep.subr.mxu0 0.0
    %1444 = vmatpush2.msra.mxu0 0.0
    %1445 = vmatprep.subr.mxu0 0.0
    %1446 = vmatpush2.msra.mxu0 0.0
    %1447 = vmatprep.subr.mxu0 0.0
    %1448 = vmatpush2.msra.mxu0 0.0
    %1449 = vmatprep.subr.mxu0 0.0
    %1450 = vmatpush2.msra.mxu0 0.0
    %1451 = vmatprep.subr.mxu0 0.0
    %1452 = vmatpush2.msra.mxu0 0.0
    %1453 = vmatprep.mubr.f32.mxu0 0.0
    %1454 = vmatmul.mubr.f32.gmra.mxu0 %v1384
    %v1455 = vpop.f32.mrf.mxu0
    %v1456 = vadd.f32 %v1375, %v1455
    %v1457 = vpop.f32.mrf.mxu0
    %1458 = vmatprep.mubr.f32.mxu0 0.0
    %1459 = vmatmul.mubr.f32.gmra.mxu0 %v1387
    %v1460 = vpop.f32.mrf.mxu0
    %v1461 = vadd.f32 %v1380, %v1460
    %v1462 = vpop.f32.mrf.mxu0
    %1463 = vdwg.mxu0
    %1465 = vset.pattern.permute.xlu0 0
    %1466 = vperm.xlu0 %1465, %v45
    %v1467 = vpop.permute.xlu0 %1466
    %1470 = vset.pattern.permute.xlu0 0
    %1471 = vperm.xlu0 %1470, %v46
    %v1472 = vpop.permute.xlu0 %1471
    %v1474 = vadd.f32 %v1456, %v1467
    %v1475 = vadd.f32 %v1461, %v1472
    %v1476 = vmax.f32 %v1474, 0.0
    %v1477 = vmax.f32 %v1475, 0.0
    %1478 = vst [vmem:[#allocation2] sm:$0xff] %v1476
    %1479 = vst [vmem:[#allocation2 + $0x8] sm:$0xff] %v1477
    %s1480 = scalar_lea.vmem %s2, 8
    %v1481 = vld [vmem:[%s1480] sm:$0xff]
    %s1482 = scalar_lea.vmem %s0, 8
    %v1483 = vld [vmem:[%s1482] sm:$0xff]
    %s1484 = scalar_lea.vmem %s1, 8
    %v1485 = vld [vmem:[%s1484] sm:$0xff]
    %v1486 = vlaneseq
    %v1487 = vshrl.u32 %v1486, 7
    %v1488 = vsub.s32 0, %v1487
    %v1489 = vrot.slane %v1483, %v1488
    %v1490 = vlaneseq
    %v1491 = vshrl.u32 %v1490, 7
    %v1492 = vsub.s32 1, %v1491
    %v1493 = vrot.slane %v1483, %v1492
    %v1494 = vlaneseq
    %v1495 = vshrl.u32 %v1494, 7
    %v1496 = vsub.s32 2, %v1495
    %v1497 = vrot.slane %v1483, %v1496
    %v1498 = vlaneseq
    %v1499 = vshrl.u32 %v1498, 7
    %v1500 = vsub.s32 3, %v1499
    %v1501 = vrot.slane %v1483, %v1500
    %v1502 = vlaneseq
    %v1503 = vshrl.u32 %v1502, 7
    %v1504 = vsub.s32 4, %v1503
    %v1505 = vrot.slane %v1483, %v1504
    %v1506 = vlaneseq
    %v1507 = vshrl.u32 %v1506, 7
    %v1508 = vsub.s32 5, %v1507
    %v1509 = vrot.slane %v1483, %v1508
    %v1510 = vlaneseq
    %v1511 = vshrl.u32 %v1510, 7
    %v1512 = vsub.s32 6, %v1511
    %v1513 = vrot.slane %v1483, %v1512
    %v1514 = vlaneseq
    %v1515 = vshrl.u32 %v1514, 7
    %v1516 = vsub.s32 7, %v1515
    %v1517 = vrot.slane %v1483, %v1516
    %vm1518 = vcmp.eq.s32.totalorder %v25, %v1489
    %vm1519 = vcmp.eq.s32.totalorder %v25, %v1493
    %vm1520 = vcmp.eq.s32.totalorder %v25, %v1497
    %vm1521 = vcmp.eq.s32.totalorder %v25, %v1501
    %vm1522 = vcmp.eq.s32.totalorder %v25, %v1505
    %vm1523 = vcmp.eq.s32.totalorder %v25, %v1509
    %vm1524 = vcmp.eq.s32.totalorder %v25, %v1513
    %vm1525 = vcmp.eq.s32.totalorder %v25, %v1517
    %vm1526 = vcmp.eq.s32.totalorder %v26, %v1489
    %vm1527 = vcmp.eq.s32.totalorder %v26, %v1493
    %vm1528 = vcmp.eq.s32.totalorder %v26, %v1497
    %vm1529 = vcmp.eq.s32.totalorder %v26, %v1501
    %vm1530 = vcmp.eq.s32.totalorder %v26, %v1505
    %vm1531 = vcmp.eq.s32.totalorder %v26, %v1509
    %vm1532 = vcmp.eq.s32.totalorder %v26, %v1513
    %vm1533 = vcmp.eq.s32.totalorder %v26, %v1517
    %vm1534 = vcmp.eq.s32.totalorder %v27, %v1489
    %vm1535 = vcmp.eq.s32.totalorder %v27, %v1493
    %vm1536 = vcmp.eq.s32.totalorder %v27, %v1497
    %vm1537 = vcmp.eq.s32.totalorder %v27, %v1501
    %vm1538 = vcmp.eq.s32.totalorder %v27, %v1505
    %vm1539 = vcmp.eq.s32.totalorder %v27, %v1509
    %vm1540 = vcmp.eq.s32.totalorder %v27, %v1513
    %vm1541 = vcmp.eq.s32.totalorder %v27, %v1517
    %vm1542 = vcmp.eq.s32.totalorder %v28, %v1489
    %vm1543 = vcmp.eq.s32.totalorder %v28, %v1493
    %vm1544 = vcmp.eq.s32.totalorder %v28, %v1497
    %vm1545 = vcmp.eq.s32.totalorder %v28, %v1501
    %vm1546 = vcmp.eq.s32.totalorder %v28, %v1505
    %vm1547 = vcmp.eq.s32.totalorder %v28, %v1509
    %vm1548 = vcmp.eq.s32.totalorder %v28, %v1513
    %vm1549 = vcmp.eq.s32.totalorder %v28, %v1517
    %vm1550 = vcmp.eq.s32.totalorder %v29, %v1489
    %vm1551 = vcmp.eq.s32.totalorder %v29, %v1493
    %vm1552 = vcmp.eq.s32.totalorder %v29, %v1497
    %vm1553 = vcmp.eq.s32.totalorder %v29, %v1501
    %vm1554 = vcmp.eq.s32.totalorder %v29, %v1505
    %vm1555 = vcmp.eq.s32.totalorder %v29, %v1509
    %vm1556 = vcmp.eq.s32.totalorder %v29, %v1513
    %vm1557 = vcmp.eq.s32.totalorder %v29, %v1517
    %vm1558 = vcmp.eq.s32.totalorder %v30, %v1489
    %vm1559 = vcmp.eq.s32.totalorder %v30, %v1493
    %vm1560 = vcmp.eq.s32.totalorder %v30, %v1497
    %vm1561 = vcmp.eq.s32.totalorder %v30, %v1501
    %vm1562 = vcmp.eq.s32.totalorder %v30, %v1505
    %vm1563 = vcmp.eq.s32.totalorder %v30, %v1509
    %vm1564 = vcmp.eq.s32.totalorder %v30, %v1513
    %vm1565 = vcmp.eq.s32.totalorder %v30, %v1517
    %vm1566 = vcmp.eq.s32.totalorder %v31, %v1489
    %vm1567 = vcmp.eq.s32.totalorder %v31, %v1493
    %vm1568 = vcmp.eq.s32.totalorder %v31, %v1497
    %vm1569 = vcmp.eq.s32.totalorder %v31, %v1501
    %vm1570 = vcmp.eq.s32.totalorder %v31, %v1505
    %vm1571 = vcmp.eq.s32.totalorder %v31, %v1509
    %vm1572 = vcmp.eq.s32.totalorder %v31, %v1513
    %vm1573 = vcmp.eq.s32.totalorder %v31, %v1517
    %vm1574 = vcmp.eq.s32.totalorder %v32, %v1489
    %vm1575 = vcmp.eq.s32.totalorder %v32, %v1493
    %vm1576 = vcmp.eq.s32.totalorder %v32, %v1497
    %vm1577 = vcmp.eq.s32.totalorder %v32, %v1501
    %vm1578 = vcmp.eq.s32.totalorder %v32, %v1505
    %vm1579 = vcmp.eq.s32.totalorder %v32, %v1509
    %vm1580 = vcmp.eq.s32.totalorder %v32, %v1513
    %vm1581 = vcmp.eq.s32.totalorder %v32, %v1517
    %vm1582 = vcmp.eq.s32.totalorder %v33, %v1489
    %vm1583 = vcmp.eq.s32.totalorder %v33, %v1493
    %vm1584 = vcmp.eq.s32.totalorder %v33, %v1497
    %vm1585 = vcmp.eq.s32.totalorder %v33, %v1501
    %vm1586 = vcmp.eq.s32.totalorder %v33, %v1505
    %vm1587 = vcmp.eq.s32.totalorder %v33, %v1509
    %vm1588 = vcmp.eq.s32.totalorder %v33, %v1513
    %vm1589 = vcmp.eq.s32.totalorder %v33, %v1517
    %vm1590 = vcmp.eq.s32.totalorder %v34, %v1489
    %vm1591 = vcmp.eq.s32.totalorder %v34, %v1493
    %vm1592 = vcmp.eq.s32.totalorder %v34, %v1497
    %vm1593 = vcmp.eq.s32.totalorder %v34, %v1501
    %vm1594 = vcmp.eq.s32.totalorder %v34, %v1505
    %vm1595 = vcmp.eq.s32.totalorder %v34, %v1509
    %vm1596 = vcmp.eq.s32.totalorder %v34, %v1513
    %vm1597 = vcmp.eq.s32.totalorder %v34, %v1517
    %vm1598 = vcmp.eq.s32.totalorder %v35, %v1489
    %vm1599 = vcmp.eq.s32.totalorder %v35, %v1493
    %vm1600 = vcmp.eq.s32.totalorder %v35, %v1497
    %vm1601 = vcmp.eq.s32.totalorder %v35, %v1501
    %vm1602 = vcmp.eq.s32.totalorder %v35, %v1505
    %vm1603 = vcmp.eq.s32.totalorder %v35, %v1509
    %vm1604 = vcmp.eq.s32.totalorder %v35, %v1513
    %vm1605 = vcmp.eq.s32.totalorder %v35, %v1517
    %vm1606 = vcmp.eq.s32.totalorder %v36, %v1489
    %vm1607 = vcmp.eq.s32.totalorder %v36, %v1493
    %vm1608 = vcmp.eq.s32.totalorder %v36, %v1497
    %vm1609 = vcmp.eq.s32.totalorder %v36, %v1501
    %vm1610 = vcmp.eq.s32.totalorder %v36, %v1505
    %vm1611 = vcmp.eq.s32.totalorder %v36, %v1509
    %vm1612 = vcmp.eq.s32.totalorder %v36, %v1513
    %vm1613 = vcmp.eq.s32.totalorder %v36, %v1517
    %vm1614 = vcmp.eq.s32.totalorder %v37, %v1489
    %vm1615 = vcmp.eq.s32.totalorder %v37, %v1493
    %vm1616 = vcmp.eq.s32.totalorder %v37, %v1497
    %vm1617 = vcmp.eq.s32.totalorder %v37, %v1501
    %vm1618 = vcmp.eq.s32.totalorder %v37, %v1505
    %vm1619 = vcmp.eq.s32.totalorder %v37, %v1509
    %vm1620 = vcmp.eq.s32.totalorder %v37, %v1513
    %vm1621 = vcmp.eq.s32.totalorder %v37, %v1517
    %vm1622 = vcmp.eq.s32.totalorder %v38, %v1489
    %vm1623 = vcmp.eq.s32.totalorder %v38, %v1493
    %vm1624 = vcmp.eq.s32.totalorder %v38, %v1497
    %vm1625 = vcmp.eq.s32.totalorder %v38, %v1501
    %vm1626 = vcmp.eq.s32.totalorder %v38, %v1505
    %vm1627 = vcmp.eq.s32.totalorder %v38, %v1509
    %vm1628 = vcmp.eq.s32.totalorder %v38, %v1513
    %vm1629 = vcmp.eq.s32.totalorder %v38, %v1517
    %vm1630 = vcmp.eq.s32.totalorder %v39, %v1489
    %vm1631 = vcmp.eq.s32.totalorder %v39, %v1493
    %vm1632 = vcmp.eq.s32.totalorder %v39, %v1497
    %vm1633 = vcmp.eq.s32.totalorder %v39, %v1501
    %vm1634 = vcmp.eq.s32.totalorder %v39, %v1505
    %vm1635 = vcmp.eq.s32.totalorder %v39, %v1509
    %vm1636 = vcmp.eq.s32.totalorder %v39, %v1513
    %vm1637 = vcmp.eq.s32.totalorder %v39, %v1517
    %vm1638 = vcmp.eq.s32.totalorder %v40, %v1489
    %vm1639 = vcmp.eq.s32.totalorder %v40, %v1493
    %vm1640 = vcmp.eq.s32.totalorder %v40, %v1497
    %vm1641 = vcmp.eq.s32.totalorder %v40, %v1501
    %vm1642 = vcmp.eq.s32.totalorder %v40, %v1505
    %vm1643 = vcmp.eq.s32.totalorder %v40, %v1509
    %vm1644 = vcmp.eq.s32.totalorder %v40, %v1513
    %vm1645 = vcmp.eq.s32.totalorder %v40, %v1517
    %v1646 = vsel %vm1518, 1, 0
    %v1647 = vsel %vm1519, 1, 0
    %v1648 = vsel %vm1520, 1, 0
    %v1649 = vsel %vm1521, 1, 0
    %v1650 = vsel %vm1522, 1, 0
    %v1651 = vsel %vm1523, 1, 0
    %v1652 = vsel %vm1524, 1, 0
    %v1653 = vsel %vm1525, 1, 0
    %v1654 = vsel %vm1526, 1, 0
    %v1655 = vsel %vm1527, 1, 0
    %v1656 = vsel %vm1528, 1, 0
    %v1657 = vsel %vm1529, 1, 0
    %v1658 = vsel %vm1530, 1, 0
    %v1659 = vsel %vm1531, 1, 0
    %v1660 = vsel %vm1532, 1, 0
    %v1661 = vsel %vm1533, 1, 0
    %v1662 = vsel %vm1534, 1, 0
    %v1663 = vsel %vm1535, 1, 0
    %v1664 = vsel %vm1536, 1, 0
    %v1665 = vsel %vm1537, 1, 0
    %v1666 = vsel %vm1538, 1, 0
    %v1667 = vsel %vm1539, 1, 0
    %v1668 = vsel %vm1540, 1, 0
    %v1669 = vsel %vm1541, 1, 0
    %v1670 = vsel %vm1542, 1, 0
    %v1671 = vsel %vm1543, 1, 0
    %v1672 = vsel %vm1544, 1, 0
    %v1673 = vsel %vm1545, 1, 0
    %v1674 = vsel %vm1546, 1, 0
    %v1675 = vsel %vm1547, 1, 0
    %v1676 = vsel %vm1548, 1, 0
    %v1677 = vsel %vm1549, 1, 0
    %v1678 = vsel %vm1550, 1, 0
    %v1679 = vsel %vm1551, 1, 0
    %v1680 = vsel %vm1552, 1, 0
    %v1681 = vsel %vm1553, 1, 0
    %v1682 = vsel %vm1554, 1, 0
    %v1683 = vsel %vm1555, 1, 0
    %v1684 = vsel %vm1556, 1, 0
    %v1685 = vsel %vm1557, 1, 0
    %v1686 = vsel %vm1558, 1, 0
    %v1687 = vsel %vm1559, 1, 0
    %v1688 = vsel %vm1560, 1, 0
    %v1689 = vsel %vm1561, 1, 0
    %v1690 = vsel %vm1562, 1, 0
    %v1691 = vsel %vm1563, 1, 0
    %v1692 = vsel %vm1564, 1, 0
    %v1693 = vsel %vm1565, 1, 0
    %v1694 = vsel %vm1566, 1, 0
    %v1695 = vsel %vm1567, 1, 0
    %v1696 = vsel %vm1568, 1, 0
    %v1697 = vsel %vm1569, 1, 0
    %v1698 = vsel %vm1570, 1, 0
    %v1699 = vsel %vm1571, 1, 0
    %v1700 = vsel %vm1572, 1, 0
    %v1701 = vsel %vm1573, 1, 0
    %v1702 = vsel %vm1574, 1, 0
    %v1703 = vsel %vm1575, 1, 0
    %v1704 = vsel %vm1576, 1, 0
    %v1705 = vsel %vm1577, 1, 0
    %v1706 = vsel %vm1578, 1, 0
    %v1707 = vsel %vm1579, 1, 0
    %v1708 = vsel %vm1580, 1, 0
    %v1709 = vsel %vm1581, 1, 0
    %v1710 = vsel %vm1582, 1, 0
    %v1711 = vsel %vm1583, 1, 0
    %v1712 = vsel %vm1584, 1, 0
    %v1713 = vsel %vm1585, 1, 0
    %v1714 = vsel %vm1586, 1, 0
    %v1715 = vsel %vm1587, 1, 0
    %v1716 = vsel %vm1588, 1, 0
    %v1717 = vsel %vm1589, 1, 0
    %v1718 = vsel %vm1590, 1, 0
    %v1719 = vsel %vm1591, 1, 0
    %v1720 = vsel %vm1592, 1, 0
    %v1721 = vsel %vm1593, 1, 0
    %v1722 = vsel %vm1594, 1, 0
    %v1723 = vsel %vm1595, 1, 0
    %v1724 = vsel %vm1596, 1, 0
    %v1725 = vsel %vm1597, 1, 0
    %v1726 = vsel %vm1598, 1, 0
    %v1727 = vsel %vm1599, 1, 0
    %v1728 = vsel %vm1600, 1, 0
    %v1729 = vsel %vm1601, 1, 0
    %v1730 = vsel %vm1602, 1, 0
    %v1731 = vsel %vm1603, 1, 0
    %v1732 = vsel %vm1604, 1, 0
    %v1733 = vsel %vm1605, 1, 0
    %v1734 = vsel %vm1606, 1, 0
    %v1735 = vsel %vm1607, 1, 0
    %v1736 = vsel %vm1608, 1, 0
    %v1737 = vsel %vm1609, 1, 0
    %v1738 = vsel %vm1610, 1, 0
    %v1739 = vsel %vm1611, 1, 0
    %v1740 = vsel %vm1612, 1, 0
    %v1741 = vsel %vm1613, 1, 0
    %v1742 = vsel %vm1614, 1, 0
    %v1743 = vsel %vm1615, 1, 0
    %v1744 = vsel %vm1616, 1, 0
    %v1745 = vsel %vm1617, 1, 0
    %v1746 = vsel %vm1618, 1, 0
    %v1747 = vsel %vm1619, 1, 0
    %v1748 = vsel %vm1620, 1, 0
    %v1749 = vsel %vm1621, 1, 0
    %v1750 = vsel %vm1622, 1, 0
    %v1751 = vsel %vm1623, 1, 0
    %v1752 = vsel %vm1624, 1, 0
    %v1753 = vsel %vm1625, 1, 0
    %v1754 = vsel %vm1626, 1, 0
    %v1755 = vsel %vm1627, 1, 0
    %v1756 = vsel %vm1628, 1, 0
    %v1757 = vsel %vm1629, 1, 0
    %v1758 = vsel %vm1630, 1, 0
    %v1759 = vsel %vm1631, 1, 0
    %v1760 = vsel %vm1632, 1, 0
    %v1761 = vsel %vm1633, 1, 0
    %v1762 = vsel %vm1634, 1, 0
    %v1763 = vsel %vm1635, 1, 0
    %v1764 = vsel %vm1636, 1, 0
    %v1765 = vsel %vm1637, 1, 0
    %v1766 = vsel %vm1638, 1, 0
    %v1767 = vsel %vm1639, 1, 0
    %v1768 = vsel %vm1640, 1, 0
    %v1769 = vsel %vm1641, 1, 0
    %v1770 = vsel %vm1642, 1, 0
    %v1771 = vsel %vm1643, 1, 0
    %v1772 = vsel %vm1644, 1, 0
    %v1773 = vsel %vm1645, 1, 0
    %v1774 = vcvt.s32.f32 %v1646
    %v1775 = vcvt.s32.f32 %v1647
    %v1776 = vcvt.s32.f32 %v1648
    %v1777 = vcvt.s32.f32 %v1649
    %v1778 = vcvt.s32.f32 %v1650
    %v1779 = vcvt.s32.f32 %v1651
    %v1780 = vcvt.s32.f32 %v1652
    %v1781 = vcvt.s32.f32 %v1653
    %v1782 = vcvt.s32.f32 %v1654
    %v1783 = vcvt.s32.f32 %v1655
    %v1784 = vcvt.s32.f32 %v1656
    %v1785 = vcvt.s32.f32 %v1657
    %v1786 = vcvt.s32.f32 %v1658
    %v1787 = vcvt.s32.f32 %v1659
    %v1788 = vcvt.s32.f32 %v1660
    %v1789 = vcvt.s32.f32 %v1661
    %v1790 = vcvt.s32.f32 %v1662
    %v1791 = vcvt.s32.f32 %v1663
    %v1792 = vcvt.s32.f32 %v1664
    %v1793 = vcvt.s32.f32 %v1665
    %v1794 = vcvt.s32.f32 %v1666
    %v1795 = vcvt.s32.f32 %v1667
    %v1796 = vcvt.s32.f32 %v1668
    %v1797 = vcvt.s32.f32 %v1669
    %v1798 = vcvt.s32.f32 %v1670
    %v1799 = vcvt.s32.f32 %v1671
    %v1800 = vcvt.s32.f32 %v1672
    %v1801 = vcvt.s32.f32 %v1673
    %v1802 = vcvt.s32.f32 %v1674
    %v1803 = vcvt.s32.f32 %v1675
    %v1804 = vcvt.s32.f32 %v1676
    %v1805 = vcvt.s32.f32 %v1677
    %v1806 = vcvt.s32.f32 %v1678
    %v1807 = vcvt.s32.f32 %v1679
    %v1808 = vcvt.s32.f32 %v1680
    %v1809 = vcvt.s32.f32 %v1681
    %v1810 = vcvt.s32.f32 %v1682
    %v1811 = vcvt.s32.f32 %v1683
    %v1812 = vcvt.s32.f32 %v1684
    %v1813 = vcvt.s32.f32 %v1685
    %v1814 = vcvt.s32.f32 %v1686
    %v1815 = vcvt.s32.f32 %v1687
    %v1816 = vcvt.s32.f32 %v1688
    %v1817 = vcvt.s32.f32 %v1689
    %v1818 = vcvt.s32.f32 %v1690
    %v1819 = vcvt.s32.f32 %v1691
    %v1820 = vcvt.s32.f32 %v1692
    %v1821 = vcvt.s32.f32 %v1693
    %v1822 = vcvt.s32.f32 %v1694
    %v1823 = vcvt.s32.f32 %v1695
    %v1824 = vcvt.s32.f32 %v1696
    %v1825 = vcvt.s32.f32 %v1697
    %v1826 = vcvt.s32.f32 %v1698
    %v1827 = vcvt.s32.f32 %v1699
    %v1828 = vcvt.s32.f32 %v1700
    %v1829 = vcvt.s32.f32 %v1701
    %v1830 = vcvt.s32.f32 %v1702
    %v1831 = vcvt.s32.f32 %v1703
    %v1832 = vcvt.s32.f32 %v1704
    %v1833 = vcvt.s32.f32 %v1705
    %v1834 = vcvt.s32.f32 %v1706
    %v1835 = vcvt.s32.f32 %v1707
    %v1836 = vcvt.s32.f32 %v1708
    %v1837 = vcvt.s32.f32 %v1709
    %v1838 = vcvt.s32.f32 %v1710
    %v1839 = vcvt.s32.f32 %v1711
    %v1840 = vcvt.s32.f32 %v1712
    %v1841 = vcvt.s32.f32 %v1713
    %v1842 = vcvt.s32.f32 %v1714
    %v1843 = vcvt.s32.f32 %v1715
    %v1844 = vcvt.s32.f32 %v1716
    %v1845 = vcvt.s32.f32 %v1717
    %v1846 = vcvt.s32.f32 %v1718
    %v1847 = vcvt.s32.f32 %v1719
    %v1848 = vcvt.s32.f32 %v1720
    %v1849 = vcvt.s32.f32 %v1721
    %v1850 = vcvt.s32.f32 %v1722
    %v1851 = vcvt.s32.f32 %v1723
    %v1852 = vcvt.s32.f32 %v1724
    %v1853 = vcvt.s32.f32 %v1725
    %v1854 = vcvt.s32.f32 %v1726
    %v1855 = vcvt.s32.f32 %v1727
    %v1856 = vcvt.s32.f32 %v1728
    %v1857 = vcvt.s32.f32 %v1729
    %v1858 = vcvt.s32.f32 %v1730
    %v1859 = vcvt.s32.f32 %v1731
    %v1860 = vcvt.s32.f32 %v1732
    %v1861 = vcvt.s32.f32 %v1733
    %v1862 = vcvt.s32.f32 %v1734
    %v1863 = vcvt.s32.f32 %v1735
    %v1864 = vcvt.s32.f32 %v1736
    %v1865 = vcvt.s32.f32 %v1737
    %v1866 = vcvt.s32.f32 %v1738
    %v1867 = vcvt.s32.f32 %v1739
    %v1868 = vcvt.s32.f32 %v1740
    %v1869 = vcvt.s32.f32 %v1741
    %v1870 = vcvt.s32.f32 %v1742
    %v1871 = vcvt.s32.f32 %v1743
    %v1872 = vcvt.s32.f32 %v1744
    %v1873 = vcvt.s32.f32 %v1745
    %v1874 = vcvt.s32.f32 %v1746
    %v1875 = vcvt.s32.f32 %v1747
    %v1876 = vcvt.s32.f32 %v1748
    %v1877 = vcvt.s32.f32 %v1749
    %v1878 = vcvt.s32.f32 %v1750
    %v1879 = vcvt.s32.f32 %v1751
    %v1880 = vcvt.s32.f32 %v1752
    %v1881 = vcvt.s32.f32 %v1753
    %v1882 = vcvt.s32.f32 %v1754
    %v1883 = vcvt.s32.f32 %v1755
    %v1884 = vcvt.s32.f32 %v1756
    %v1885 = vcvt.s32.f32 %v1757
    %v1886 = vcvt.s32.f32 %v1758
    %v1887 = vcvt.s32.f32 %v1759
    %v1888 = vcvt.s32.f32 %v1760
    %v1889 = vcvt.s32.f32 %v1761
    %v1890 = vcvt.s32.f32 %v1762
    %v1891 = vcvt.s32.f32 %v1763
    %v1892 = vcvt.s32.f32 %v1764
    %v1893 = vcvt.s32.f32 %v1765
    %v1894 = vcvt.s32.f32 %v1766
    %v1895 = vcvt.s32.f32 %v1767
    %v1896 = vcvt.s32.f32 %v1768
    %v1897 = vcvt.s32.f32 %v1769
    %v1898 = vcvt.s32.f32 %v1770
    %v1899 = vcvt.s32.f32 %v1771
    %v1900 = vcvt.s32.f32 %v1772
    %v1901 = vcvt.s32.f32 %v1773
    %v1902 = vlaneseq
    %v1903 = vshrl.u32 %v1902, 7
    %v1904 = vsub.s32 0, %v1903
    %v1905 = vrot.slane %v1485, %v1904
    %v1906 = vlaneseq
    %v1907 = vshrl.u32 %v1906, 7
    %v1908 = vsub.s32 1, %v1907
    %v1909 = vrot.slane %v1485, %v1908
    %v1910 = vlaneseq
    %v1911 = vshrl.u32 %v1910, 7
    %v1912 = vsub.s32 2, %v1911
    %v1913 = vrot.slane %v1485, %v1912
    %v1914 = vlaneseq
    %v1915 = vshrl.u32 %v1914, 7
    %v1916 = vsub.s32 3, %v1915
    %v1917 = vrot.slane %v1485, %v1916
    %v1918 = vlaneseq
    %v1919 = vshrl.u32 %v1918, 7
    %v1920 = vsub.s32 4, %v1919
    %v1921 = vrot.slane %v1485, %v1920
    %v1922 = vlaneseq
    %v1923 = vshrl.u32 %v1922, 7
    %v1924 = vsub.s32 5, %v1923
    %v1925 = vrot.slane %v1485, %v1924
    %v1926 = vlaneseq
    %v1927 = vshrl.u32 %v1926, 7
    %v1928 = vsub.s32 6, %v1927
    %v1929 = vrot.slane %v1485, %v1928
    %v1930 = vlaneseq
    %v1931 = vshrl.u32 %v1930, 7
    %v1932 = vsub.s32 7, %v1931
    %v1933 = vrot.slane %v1485, %v1932
    %vm1934 = vcmp.eq.s32.totalorder %v25, %v1905
    %vm1935 = vcmp.eq.s32.totalorder %v25, %v1909
    %vm1936 = vcmp.eq.s32.totalorder %v25, %v1913
    %vm1937 = vcmp.eq.s32.totalorder %v25, %v1917
    %vm1938 = vcmp.eq.s32.totalorder %v25, %v1921
    %vm1939 = vcmp.eq.s32.totalorder %v25, %v1925
    %vm1940 = vcmp.eq.s32.totalorder %v25, %v1929
    %vm1941 = vcmp.eq.s32.totalorder %v25, %v1933
    %vm1942 = vcmp.eq.s32.totalorder %v26, %v1905
    %vm1943 = vcmp.eq.s32.totalorder %v26, %v1909
    %vm1944 = vcmp.eq.s32.totalorder %v26, %v1913
    %vm1945 = vcmp.eq.s32.totalorder %v26, %v1917
    %vm1946 = vcmp.eq.s32.totalorder %v26, %v1921
    %vm1947 = vcmp.eq.s32.totalorder %v26, %v1925
    %vm1948 = vcmp.eq.s32.totalorder %v26, %v1929
    %vm1949 = vcmp.eq.s32.totalorder %v26, %v1933
    %vm1950 = vcmp.eq.s32.totalorder %v27, %v1905
    %vm1951 = vcmp.eq.s32.totalorder %v27, %v1909
    %vm1952 = vcmp.eq.s32.totalorder %v27, %v1913
    %vm1953 = vcmp.eq.s32.totalorder %v27, %v1917
    %vm1954 = vcmp.eq.s32.totalorder %v27, %v1921
    %vm1955 = vcmp.eq.s32.totalorder %v27, %v1925
    %vm1956 = vcmp.eq.s32.totalorder %v27, %v1929
    %vm1957 = vcmp.eq.s32.totalorder %v27, %v1933
    %vm1958 = vcmp.eq.s32.totalorder %v28, %v1905
    %vm1959 = vcmp.eq.s32.totalorder %v28, %v1909
    %vm1960 = vcmp.eq.s32.totalorder %v28, %v1913
    %vm1961 = vcmp.eq.s32.totalorder %v28, %v1917
    %vm1962 = vcmp.eq.s32.totalorder %v28, %v1921
    %vm1963 = vcmp.eq.s32.totalorder %v28, %v1925
    %vm1964 = vcmp.eq.s32.totalorder %v28, %v1929
    %vm1965 = vcmp.eq.s32.totalorder %v28, %v1933
    %vm1966 = vcmp.eq.s32.totalorder %v29, %v1905
    %vm1967 = vcmp.eq.s32.totalorder %v29, %v1909
    %vm1968 = vcmp.eq.s32.totalorder %v29, %v1913
    %vm1969 = vcmp.eq.s32.totalorder %v29, %v1917
    %vm1970 = vcmp.eq.s32.totalorder %v29, %v1921
    %vm1971 = vcmp.eq.s32.totalorder %v29, %v1925
    %vm1972 = vcmp.eq.s32.totalorder %v29, %v1929
    %vm1973 = vcmp.eq.s32.totalorder %v29, %v1933
    %vm1974 = vcmp.eq.s32.totalorder %v30, %v1905
    %vm1975 = vcmp.eq.s32.totalorder %v30, %v1909
    %vm1976 = vcmp.eq.s32.totalorder %v30, %v1913
    %vm1977 = vcmp.eq.s32.totalorder %v30, %v1917
    %vm1978 = vcmp.eq.s32.totalorder %v30, %v1921
    %vm1979 = vcmp.eq.s32.totalorder %v30, %v1925
    %vm1980 = vcmp.eq.s32.totalorder %v30, %v1929
    %vm1981 = vcmp.eq.s32.totalorder %v30, %v1933
    %vm1982 = vcmp.eq.s32.totalorder %v31, %v1905
    %vm1983 = vcmp.eq.s32.totalorder %v31, %v1909
    %vm1984 = vcmp.eq.s32.totalorder %v31, %v1913
    %vm1985 = vcmp.eq.s32.totalorder %v31, %v1917
    %vm1986 = vcmp.eq.s32.totalorder %v31, %v1921
    %vm1987 = vcmp.eq.s32.totalorder %v31, %v1925
    %vm1988 = vcmp.eq.s32.totalorder %v31, %v1929
    %vm1989 = vcmp.eq.s32.totalorder %v31, %v1933
    %vm1990 = vcmp.eq.s32.totalorder %v32, %v1905
    %vm1991 = vcmp.eq.s32.totalorder %v32, %v1909
    %vm1992 = vcmp.eq.s32.totalorder %v32, %v1913
    %vm1993 = vcmp.eq.s32.totalorder %v32, %v1917
    %vm1994 = vcmp.eq.s32.totalorder %v32, %v1921
    %vm1995 = vcmp.eq.s32.totalorder %v32, %v1925
    %vm1996 = vcmp.eq.s32.totalorder %v32, %v1929
    %vm1997 = vcmp.eq.s32.totalorder %v32, %v1933
    %vm1998 = vcmp.eq.s32.totalorder %v33, %v1905
    %vm1999 = vcmp.eq.s32.totalorder %v33, %v1909
    %vm2000 = vcmp.eq.s32.totalorder %v33, %v1913
    %vm2001 = vcmp.eq.s32.totalorder %v33, %v1917
    %vm2002 = vcmp.eq.s32.totalorder %v33, %v1921
    %vm2003 = vcmp.eq.s32.totalorder %v33, %v1925
    %vm2004 = vcmp.eq.s32.totalorder %v33, %v1929
    %vm2005 = vcmp.eq.s32.totalorder %v33, %v1933
    %vm2006 = vcmp.eq.s32.totalorder %v34, %v1905
    %vm2007 = vcmp.eq.s32.totalorder %v34, %v1909
    %vm2008 = vcmp.eq.s32.totalorder %v34, %v1913
    %vm2009 = vcmp.eq.s32.totalorder %v34, %v1917
    %vm2010 = vcmp.eq.s32.totalorder %v34, %v1921
    %vm2011 = vcmp.eq.s32.totalorder %v34, %v1925
    %vm2012 = vcmp.eq.s32.totalorder %v34, %v1929
    %vm2013 = vcmp.eq.s32.totalorder %v34, %v1933
    %vm2014 = vcmp.eq.s32.totalorder %v35, %v1905
    %vm2015 = vcmp.eq.s32.totalorder %v35, %v1909
    %vm2016 = vcmp.eq.s32.totalorder %v35, %v1913
    %vm2017 = vcmp.eq.s32.totalorder %v35, %v1917
    %vm2018 = vcmp.eq.s32.totalorder %v35, %v1921
    %vm2019 = vcmp.eq.s32.totalorder %v35, %v1925
    %vm2020 = vcmp.eq.s32.totalorder %v35, %v1929
    %vm2021 = vcmp.eq.s32.totalorder %v35, %v1933
    %vm2022 = vcmp.eq.s32.totalorder %v36, %v1905
    %vm2023 = vcmp.eq.s32.totalorder %v36, %v1909
    %vm2024 = vcmp.eq.s32.totalorder %v36, %v1913
    %vm2025 = vcmp.eq.s32.totalorder %v36, %v1917
    %vm2026 = vcmp.eq.s32.totalorder %v36, %v1921
    %vm2027 = vcmp.eq.s32.totalorder %v36, %v1925
    %vm2028 = vcmp.eq.s32.totalorder %v36, %v1929
    %vm2029 = vcmp.eq.s32.totalorder %v36, %v1933
    %vm2030 = vcmp.eq.s32.totalorder %v37, %v1905
    %vm2031 = vcmp.eq.s32.totalorder %v37, %v1909
    %vm2032 = vcmp.eq.s32.totalorder %v37, %v1913
    %vm2033 = vcmp.eq.s32.totalorder %v37, %v1917
    %vm2034 = vcmp.eq.s32.totalorder %v37, %v1921
    %vm2035 = vcmp.eq.s32.totalorder %v37, %v1925
    %vm2036 = vcmp.eq.s32.totalorder %v37, %v1929
    %vm2037 = vcmp.eq.s32.totalorder %v37, %v1933
    %vm2038 = vcmp.eq.s32.totalorder %v38, %v1905
    %vm2039 = vcmp.eq.s32.totalorder %v38, %v1909
    %vm2040 = vcmp.eq.s32.totalorder %v38, %v1913
    %vm2041 = vcmp.eq.s32.totalorder %v38, %v1917
    %vm2042 = vcmp.eq.s32.totalorder %v38, %v1921
    %vm2043 = vcmp.eq.s32.totalorder %v38, %v1925
    %vm2044 = vcmp.eq.s32.totalorder %v38, %v1929
    %vm2045 = vcmp.eq.s32.totalorder %v38, %v1933
    %vm2046 = vcmp.eq.s32.totalorder %v39, %v1905
    %vm2047 = vcmp.eq.s32.totalorder %v39, %v1909
    %vm2048 = vcmp.eq.s32.totalorder %v39, %v1913
    %vm2049 = vcmp.eq.s32.totalorder %v39, %v1917
    %vm2050 = vcmp.eq.s32.totalorder %v39, %v1921
    %vm2051 = vcmp.eq.s32.totalorder %v39, %v1925
    %vm2052 = vcmp.eq.s32.totalorder %v39, %v1929
    %vm2053 = vcmp.eq.s32.totalorder %v39, %v1933
    %vm2054 = vcmp.eq.s32.totalorder %v40, %v1905
    %vm2055 = vcmp.eq.s32.totalorder %v40, %v1909
    %vm2056 = vcmp.eq.s32.totalorder %v40, %v1913
    %vm2057 = vcmp.eq.s32.totalorder %v40, %v1917
    %vm2058 = vcmp.eq.s32.totalorder %v40, %v1921
    %vm2059 = vcmp.eq.s32.totalorder %v40, %v1925
    %vm2060 = vcmp.eq.s32.totalorder %v40, %v1929
    %vm2061 = vcmp.eq.s32.totalorder %v40, %v1933
    %v2062 = vsel %vm1934, 1, 0
    %v2063 = vsel %vm1935, 1, 0
    %v2064 = vsel %vm1936, 1, 0
    %v2065 = vsel %vm1937, 1, 0
    %v2066 = vsel %vm1938, 1, 0
    %v2067 = vsel %vm1939, 1, 0
    %v2068 = vsel %vm1940, 1, 0
    %v2069 = vsel %vm1941, 1, 0
    %v2070 = vsel %vm1942, 1, 0
    %v2071 = vsel %vm1943, 1, 0
    %v2072 = vsel %vm1944, 1, 0
    %v2073 = vsel %vm1945, 1, 0
    %v2074 = vsel %vm1946, 1, 0
    %v2075 = vsel %vm1947, 1, 0
    %v2076 = vsel %vm1948, 1, 0
    %v2077 = vsel %vm1949, 1, 0
    %v2078 = vsel %vm1950, 1, 0
    %v2079 = vsel %vm1951, 1, 0
    %v2080 = vsel %vm1952, 1, 0
    %v2081 = vsel %vm1953, 1, 0
    %v2082 = vsel %vm1954, 1, 0
    %v2083 = vsel %vm1955, 1, 0
    %v2084 = vsel %vm1956, 1, 0
    %v2085 = vsel %vm1957, 1, 0
    %v2086 = vsel %vm1958, 1, 0
    %v2087 = vsel %vm1959, 1, 0
    %v2088 = vsel %vm1960, 1, 0
    %v2089 = vsel %vm1961, 1, 0
    %v2090 = vsel %vm1962, 1, 0
    %v2091 = vsel %vm1963, 1, 0
    %v2092 = vsel %vm1964, 1, 0
    %v2093 = vsel %vm1965, 1, 0
    %v2094 = vsel %vm1966, 1, 0
    %v2095 = vsel %vm1967, 1, 0
    %v2096 = vsel %vm1968, 1, 0
    %v2097 = vsel %vm1969, 1, 0
    %v2098 = vsel %vm1970, 1, 0
    %v2099 = vsel %vm1971, 1, 0
    %v2100 = vsel %vm1972, 1, 0
    %v2101 = vsel %vm1973, 1, 0
    %v2102 = vsel %vm1974, 1, 0
    %v2103 = vsel %vm1975, 1, 0
    %v2104 = vsel %vm1976, 1, 0
    %v2105 = vsel %vm1977, 1, 0
    %v2106 = vsel %vm1978, 1, 0
    %v2107 = vsel %vm1979, 1, 0
    %v2108 = vsel %vm1980, 1, 0
    %v2109 = vsel %vm1981, 1, 0
    %v2110 = vsel %vm1982, 1, 0
    %v2111 = vsel %vm1983, 1, 0
    %v2112 = vsel %vm1984, 1, 0
    %v2113 = vsel %vm1985, 1, 0
    %v2114 = vsel %vm1986, 1, 0
    %v2115 = vsel %vm1987, 1, 0
    %v2116 = vsel %vm1988, 1, 0
    %v2117 = vsel %vm1989, 1, 0
    %v2118 = vsel %vm1990, 1, 0
    %v2119 = vsel %vm1991, 1, 0
    %v2120 = vsel %vm1992, 1, 0
    %v2121 = vsel %vm1993, 1, 0
    %v2122 = vsel %vm1994, 1, 0
    %v2123 = vsel %vm1995, 1, 0
    %v2124 = vsel %vm1996, 1, 0
    %v2125 = vsel %vm1997, 1, 0
    %v2126 = vsel %vm1998, 1, 0
    %v2127 = vsel %vm1999, 1, 0
    %v2128 = vsel %vm2000, 1, 0
    %v2129 = vsel %vm2001, 1, 0
    %v2130 = vsel %vm2002, 1, 0
    %v2131 = vsel %vm2003, 1, 0
    %v2132 = vsel %vm2004, 1, 0
    %v2133 = vsel %vm2005, 1, 0
    %v2134 = vsel %vm2006, 1, 0
    %v2135 = vsel %vm2007, 1, 0
    %v2136 = vsel %vm2008, 1, 0
    %v2137 = vsel %vm2009, 1, 0
    %v2138 = vsel %vm2010, 1, 0
    %v2139 = vsel %vm2011, 1, 0
    %v2140 = vsel %vm2012, 1, 0
    %v2141 = vsel %vm2013, 1, 0
    %v2142 = vsel %vm2014, 1, 0
    %v2143 = vsel %vm2015, 1, 0
    %v2144 = vsel %vm2016, 1, 0
    %v2145 = vsel %vm2017, 1, 0
    %v2146 = vsel %vm2018, 1, 0
    %v2147 = vsel %vm2019, 1, 0
    %v2148 = vsel %vm2020, 1, 0
    %v2149 = vsel %vm2021, 1, 0
    %v2150 = vsel %vm2022, 1, 0
    %v2151 = vsel %vm2023, 1, 0
    %v2152 = vsel %vm2024, 1, 0
    %v2153 = vsel %vm2025, 1, 0
    %v2154 = vsel %vm2026, 1, 0
    %v2155 = vsel %vm2027, 1, 0
    %v2156 = vsel %vm2028, 1, 0
    %v2157 = vsel %vm2029, 1, 0
    %v2158 = vsel %vm2030, 1, 0
    %v2159 = vsel %vm2031, 1, 0
    %v2160 = vsel %vm2032, 1, 0
    %v2161 = vsel %vm2033, 1, 0
    %v2162 = vsel %vm2034, 1, 0
    %v2163 = vsel %vm2035, 1, 0
    %v2164 = vsel %vm2036, 1, 0
    %v2165 = vsel %vm2037, 1, 0
    %v2166 = vsel %vm2038, 1, 0
    %v2167 = vsel %vm2039, 1, 0
    %v2168 = vsel %vm2040, 1, 0
    %v2169 = vsel %vm2041, 1, 0
    %v2170 = vsel %vm2042, 1, 0
    %v2171 = vsel %vm2043, 1, 0
    %v2172 = vsel %vm2044, 1, 0
    %v2173 = vsel %vm2045, 1, 0
    %v2174 = vsel %vm2046, 1, 0
    %v2175 = vsel %vm2047, 1, 0
    %v2176 = vsel %vm2048, 1, 0
    %v2177 = vsel %vm2049, 1, 0
    %v2178 = vsel %vm2050, 1, 0
    %v2179 = vsel %vm2051, 1, 0
    %v2180 = vsel %vm2052, 1, 0
    %v2181 = vsel %vm2053, 1, 0
    %v2182 = vsel %vm2054, 1, 0
    %v2183 = vsel %vm2055, 1, 0
    %v2184 = vsel %vm2056, 1, 0
    %v2185 = vsel %vm2057, 1, 0
    %v2186 = vsel %vm2058, 1, 0
    %v2187 = vsel %vm2059, 1, 0
    %v2188 = vsel %vm2060, 1, 0
    %v2189 = vsel %vm2061, 1, 0
    %v2190 = vcvt.s32.f32 %v2062
    %v2191 = vcvt.s32.f32 %v2063
    %v2192 = vcvt.s32.f32 %v2064
    %v2193 = vcvt.s32.f32 %v2065
    %v2194 = vcvt.s32.f32 %v2066
    %v2195 = vcvt.s32.f32 %v2067
    %v2196 = vcvt.s32.f32 %v2068
    %v2197 = vcvt.s32.f32 %v2069
    %v2198 = vcvt.s32.f32 %v2070
    %v2199 = vcvt.s32.f32 %v2071
    %v2200 = vcvt.s32.f32 %v2072
    %v2201 = vcvt.s32.f32 %v2073
    %v2202 = vcvt.s32.f32 %v2074
    %v2203 = vcvt.s32.f32 %v2075
    %v2204 = vcvt.s32.f32 %v2076
    %v2205 = vcvt.s32.f32 %v2077
    %v2206 = vcvt.s32.f32 %v2078
    %v2207 = vcvt.s32.f32 %v2079
    %v2208 = vcvt.s32.f32 %v2080
    %v2209 = vcvt.s32.f32 %v2081
    %v2210 = vcvt.s32.f32 %v2082
    %v2211 = vcvt.s32.f32 %v2083
    %v2212 = vcvt.s32.f32 %v2084
    %v2213 = vcvt.s32.f32 %v2085
    %v2214 = vcvt.s32.f32 %v2086
    %v2215 = vcvt.s32.f32 %v2087
    %v2216 = vcvt.s32.f32 %v2088
    %v2217 = vcvt.s32.f32 %v2089
    %v2218 = vcvt.s32.f32 %v2090
    %v2219 = vcvt.s32.f32 %v2091
    %v2220 = vcvt.s32.f32 %v2092
    %v2221 = vcvt.s32.f32 %v2093
    %v2222 = vcvt.s32.f32 %v2094
    %v2223 = vcvt.s32.f32 %v2095
    %v2224 = vcvt.s32.f32 %v2096
    %v2225 = vcvt.s32.f32 %v2097
    %v2226 = vcvt.s32.f32 %v2098
    %v2227 = vcvt.s32.f32 %v2099
    %v2228 = vcvt.s32.f32 %v2100
    %v2229 = vcvt.s32.f32 %v2101
    %v2230 = vcvt.s32.f32 %v2102
    %v2231 = vcvt.s32.f32 %v2103
    %v2232 = vcvt.s32.f32 %v2104
    %v2233 = vcvt.s32.f32 %v2105
    %v2234 = vcvt.s32.f32 %v2106
    %v2235 = vcvt.s32.f32 %v2107
    %v2236 = vcvt.s32.f32 %v2108
    %v2237 = vcvt.s32.f32 %v2109
    %v2238 = vcvt.s32.f32 %v2110
    %v2239 = vcvt.s32.f32 %v2111
    %v2240 = vcvt.s32.f32 %v2112
    %v2241 = vcvt.s32.f32 %v2113
    %v2242 = vcvt.s32.f32 %v2114
    %v2243 = vcvt.s32.f32 %v2115
    %v2244 = vcvt.s32.f32 %v2116
    %v2245 = vcvt.s32.f32 %v2117
    %v2246 = vcvt.s32.f32 %v2118
    %v2247 = vcvt.s32.f32 %v2119
    %v2248 = vcvt.s32.f32 %v2120
    %v2249 = vcvt.s32.f32 %v2121
    %v2250 = vcvt.s32.f32 %v2122
    %v2251 = vcvt.s32.f32 %v2123
    %v2252 = vcvt.s32.f32 %v2124
    %v2253 = vcvt.s32.f32 %v2125
    %v2254 = vcvt.s32.f32 %v2126
    %v2255 = vcvt.s32.f32 %v2127
    %v2256 = vcvt.s32.f32 %v2128
    %v2257 = vcvt.s32.f32 %v2129
    %v2258 = vcvt.s32.f32 %v2130
    %v2259 = vcvt.s32.f32 %v2131
    %v2260 = vcvt.s32.f32 %v2132
    %v2261 = vcvt.s32.f32 %v2133
    %v2262 = vcvt.s32.f32 %v2134
    %v2263 = vcvt.s32.f32 %v2135
    %v2264 = vcvt.s32.f32 %v2136
    %v2265 = vcvt.s32.f32 %v2137
    %v2266 = vcvt.s32.f32 %v2138
    %v2267 = vcvt.s32.f32 %v2139
    %v2268 = vcvt.s32.f32 %v2140
    %v2269 = vcvt.s32.f32 %v2141
    %v2270 = vcvt.s32.f32 %v2142
    %v2271 = vcvt.s32.f32 %v2143
    %v2272 = vcvt.s32.f32 %v2144
    %v2273 = vcvt.s32.f32 %v2145
    %v2274 = vcvt.s32.f32 %v2146
    %v2275 = vcvt.s32.f32 %v2147
    %v2276 = vcvt.s32.f32 %v2148
    %v2277 = vcvt.s32.f32 %v2149
    %v2278 = vcvt.s32.f32 %v2150
    %v2279 = vcvt.s32.f32 %v2151
    %v2280 = vcvt.s32.f32 %v2152
    %v2281 = vcvt.s32.f32 %v2153
    %v2282 = vcvt.s32.f32 %v2154
    %v2283 = vcvt.s32.f32 %v2155
    %v2284 = vcvt.s32.f32 %v2156
    %v2285 = vcvt.s32.f32 %v2157
    %v2286 = vcvt.s32.f32 %v2158
    %v2287 = vcvt.s32.f32 %v2159
    %v2288 = vcvt.s32.f32 %v2160
    %v2289 = vcvt.s32.f32 %v2161
    %v2290 = vcvt.s32.f32 %v2162
    %v2291 = vcvt.s32.f32 %v2163
    %v2292 = vcvt.s32.f32 %v2164
    %v2293 = vcvt.s32.f32 %v2165
    %v2294 = vcvt.s32.f32 %v2166
    %v2295 = vcvt.s32.f32 %v2167
    %v2296 = vcvt.s32.f32 %v2168
    %v2297 = vcvt.s32.f32 %v2169
    %v2298 = vcvt.s32.f32 %v2170
    %v2299 = vcvt.s32.f32 %v2171
    %v2300 = vcvt.s32.f32 %v2172
    %v2301 = vcvt.s32.f32 %v2173
    %v2302 = vcvt.s32.f32 %v2174
    %v2303 = vcvt.s32.f32 %v2175
    %v2304 = vcvt.s32.f32 %v2176
    %v2305 = vcvt.s32.f32 %v2177
    %v2306 = vcvt.s32.f32 %v2178
    %v2307 = vcvt.s32.f32 %v2179
    %v2308 = vcvt.s32.f32 %v2180
    %v2309 = vcvt.s32.f32 %v2181
    %v2310 = vcvt.s32.f32 %v2182
    %v2311 = vcvt.s32.f32 %v2183
    %v2312 = vcvt.s32.f32 %v2184
    %v2313 = vcvt.s32.f32 %v2185
    %v2314 = vcvt.s32.f32 %v2186
    %v2315 = vcvt.s32.f32 %v2187
    %v2316 = vcvt.s32.f32 %v2188
    %v2317 = vcvt.s32.f32 %v2189
    %v2318 = vsub.f32 %v1774, %v2190
    %v2319 = vsub.f32 %v1775, %v2191
    %v2320 = vsub.f32 %v1776, %v2192
    %v2321 = vsub.f32 %v1777, %v2193
    %v2322 = vsub.f32 %v1778, %v2194
    %v2323 = vsub.f32 %v1779, %v2195
    %v2324 = vsub.f32 %v1780, %v2196
    %v2325 = vsub.f32 %v1781, %v2197
    %v2326 = vsub.f32 %v1782, %v2198
    %v2327 = vsub.f32 %v1783, %v2199
    %v2328 = vsub.f32 %v1784, %v2200
    %v2329 = vsub.f32 %v1785, %v2201
    %v2330 = vsub.f32 %v1786, %v2202
    %v2331 = vsub.f32 %v1787, %v2203
    %v2332 = vsub.f32 %v1788, %v2204
    %v2333 = vsub.f32 %v1789, %v2205
    %v2334 = vsub.f32 %v1790, %v2206
    %v2335 = vsub.f32 %v1791, %v2207
    %v2336 = vsub.f32 %v1792, %v2208
    %v2337 = vsub.f32 %v1793, %v2209
    %v2338 = vsub.f32 %v1794, %v2210
    %v2339 = vsub.f32 %v1795, %v2211
    %v2340 = vsub.f32 %v1796, %v2212
    %v2341 = vsub.f32 %v1797, %v2213
    %v2342 = vsub.f32 %v1798, %v2214
    %v2343 = vsub.f32 %v1799, %v2215
    %v2344 = vsub.f32 %v1800, %v2216
    %v2345 = vsub.f32 %v1801, %v2217
    %v2346 = vsub.f32 %v1802, %v2218
    %v2347 = vsub.f32 %v1803, %v2219
    %v2348 = vsub.f32 %v1804, %v2220
    %v2349 = vsub.f32 %v1805, %v2221
    %v2350 = vsub.f32 %v1806, %v2222
    %v2351 = vsub.f32 %v1807, %v2223
    %v2352 = vsub.f32 %v1808, %v2224
    %v2353 = vsub.f32 %v1809, %v2225
    %v2354 = vsub.f32 %v1810, %v2226
    %v2355 = vsub.f32 %v1811, %v2227
    %v2356 = vsub.f32 %v1812, %v2228
    %v2357 = vsub.f32 %v1813, %v2229
    %v2358 = vsub.f32 %v1814, %v2230
    %v2359 = vsub.f32 %v1815, %v2231
    %v2360 = vsub.f32 %v1816, %v2232
    %v2361 = vsub.f32 %v1817, %v2233
    %v2362 = vsub.f32 %v1818, %v2234
    %v2363 = vsub.f32 %v1819, %v2235
    %v2364 = vsub.f32 %v1820, %v2236
    %v2365 = vsub.f32 %v1821, %v2237
    %v2366 = vsub.f32 %v1822, %v2238
    %v2367 = vsub.f32 %v1823, %v2239
    %v2368 = vsub.f32 %v1824, %v2240
    %v2369 = vsub.f32 %v1825, %v2241
    %v2370 = vsub.f32 %v1826, %v2242
    %v2371 = vsub.f32 %v1827, %v2243
    %v2372 = vsub.f32 %v1828, %v2244
    %v2373 = vsub.f32 %v1829, %v2245
    %v2374 = vsub.f32 %v1830, %v2246
    %v2375 = vsub.f32 %v1831, %v2247
    %v2376 = vsub.f32 %v1832, %v2248
    %v2377 = vsub.f32 %v1833, %v2249
    %v2378 = vsub.f32 %v1834, %v2250
    %v2379 = vsub.f32 %v1835, %v2251
    %v2380 = vsub.f32 %v1836, %v2252
    %v2381 = vsub.f32 %v1837, %v2253
    %v2382 = vsub.f32 %v1838, %v2254
    %v2383 = vsub.f32 %v1839, %v2255
    %v2384 = vsub.f32 %v1840, %v2256
    %v2385 = vsub.f32 %v1841, %v2257
    %v2386 = vsub.f32 %v1842, %v2258
    %v2387 = vsub.f32 %v1843, %v2259
    %v2388 = vsub.f32 %v1844, %v2260
    %v2389 = vsub.f32 %v1845, %v2261
    %v2390 = vsub.f32 %v1846, %v2262
    %v2391 = vsub.f32 %v1847, %v2263
    %v2392 = vsub.f32 %v1848, %v2264
    %v2393 = vsub.f32 %v1849, %v2265
    %v2394 = vsub.f32 %v1850, %v2266
    %v2395 = vsub.f32 %v1851, %v2267
    %v2396 = vsub.f32 %v1852, %v2268
    %v2397 = vsub.f32 %v1853, %v2269
    %v2398 = vsub.f32 %v1854, %v2270
    %v2399 = vsub.f32 %v1855, %v2271
    %v2400 = vsub.f32 %v1856, %v2272
    %v2401 = vsub.f32 %v1857, %v2273
    %v2402 = vsub.f32 %v1858, %v2274
    %v2403 = vsub.f32 %v1859, %v2275
    %v2404 = vsub.f32 %v1860, %v2276
    %v2405 = vsub.f32 %v1861, %v2277
    %v2406 = vsub.f32 %v1862, %v2278
    %v2407 = vsub.f32 %v1863, %v2279
    %v2408 = vsub.f32 %v1864, %v2280
    %v2409 = vsub.f32 %v1865, %v2281
    %v2410 = vsub.f32 %v1866, %v2282
    %v2411 = vsub.f32 %v1867, %v2283
    %v2412 = vsub.f32 %v1868, %v2284
    %v2413 = vsub.f32 %v1869, %v2285
    %v2414 = vsub.f32 %v1870, %v2286
    %v2415 = vsub.f32 %v1871, %v2287
    %v2416 = vsub.f32 %v1872, %v2288
    %v2417 = vsub.f32 %v1873, %v2289
    %v2418 = vsub.f32 %v1874, %v2290
    %v2419 = vsub.f32 %v1875, %v2291
    %v2420 = vsub.f32 %v1876, %v2292
    %v2421 = vsub.f32 %v1877, %v2293
    %v2422 = vsub.f32 %v1878, %v2294
    %v2423 = vsub.f32 %v1879, %v2295
    %v2424 = vsub.f32 %v1880, %v2296
    %v2425 = vsub.f32 %v1881, %v2297
    %v2426 = vsub.f32 %v1882, %v2298
    %v2427 = vsub.f32 %v1883, %v2299
    %v2428 = vsub.f32 %v1884, %v2300
    %v2429 = vsub.f32 %v1885, %v2301
    %v2430 = vsub.f32 %v1886, %v2302
    %v2431 = vsub.f32 %v1887, %v2303
    %v2432 = vsub.f32 %v1888, %v2304
    %v2433 = vsub.f32 %v1889, %v2305
    %v2434 = vsub.f32 %v1890, %v2306
    %v2435 = vsub.f32 %v1891, %v2307
    %v2436 = vsub.f32 %v1892, %v2308
    %v2437 = vsub.f32 %v1893, %v2309
    %v2438 = vsub.f32 %v1894, %v2310
    %v2439 = vsub.f32 %v1895, %v2311
    %v2440 = vsub.f32 %v1896, %v2312
    %v2441 = vsub.f32 %v1897, %v2313
    %v2442 = vsub.f32 %v1898, %v2314
    %v2443 = vsub.f32 %v1899, %v2315
    %v2444 = vsub.f32 %v1900, %v2316
    %v2445 = vsub.f32 %v1901, %v2317
    %2446 = vmatprep.subr.mxu0 %v2439
    %2447 = vmatpush1.msra.mxu0 %v2438
    %2448 = vmatprep.subr.mxu0 %v2431
    %2449 = vmatpush1.msra.mxu0 %v2430
    %2450 = vmatprep.subr.mxu0 %v2423
    %2451 = vmatpush1.msra.mxu0 %v2422
    %2452 = vmatprep.subr.mxu0 %v2415
    %2453 = vmatpush1.msra.mxu0 %v2414
    %2454 = vmatprep.subr.mxu0 %v2407
    %2455 = vmatpush1.msra.mxu0 %v2406
    %2456 = vmatprep.subr.mxu0 %v2399
    %2457 = vmatpush1.msra.mxu0 %v2398
    %2458 = vmatprep.subr.mxu0 %v2391
    %2459 = vmatpush1.msra.mxu0 %v2390
    %2460 = vmatprep.subr.mxu0 %v2383
    %2461 = vmatpush1.msra.mxu0 %v2382
    %2462 = vmatprep.subr.mxu0 %v2375
    %2463 = vmatpush1.msra.mxu0 %v2374
    %2464 = vmatprep.subr.mxu0 %v2367
    %2465 = vmatpush1.msra.mxu0 %v2366
    %2466 = vmatprep.subr.mxu0 %v2359
    %2467 = vmatpush1.msra.mxu0 %v2358
    %2468 = vmatprep.subr.mxu0 %v2351
    %2469 = vmatpush1.msra.mxu0 %v2350
    %2470 = vmatprep.subr.mxu0 %v2343
    %2471 = vmatpush1.msra.mxu0 %v2342
    %2472 = vmatprep.subr.mxu0 %v2335
    %2473 = vmatpush1.msra.mxu0 %v2334
    %2474 = vmatprep.subr.mxu0 %v2327
    %2475 = vmatpush1.msra.mxu0 %v2326
    %2476 = vmatprep.subr.mxu0 %v2319
    %2477 = vmatpush1.msra.mxu0 %v2318
    %2478 = vmatprep.subr.mxu0 0.0
    %2479 = vmatpush2.msra.mxu0 0.0
    %2480 = vmatprep.subr.mxu0 0.0
    %2481 = vmatpush2.msra.mxu0 0.0
    %2482 = vmatprep.subr.mxu0 0.0
    %2483 = vmatpush2.msra.mxu0 0.0
    %2484 = vmatprep.subr.mxu0 0.0
    %2485 = vmatpush2.msra.mxu0 0.0
    %2486 = vmatprep.subr.mxu0 0.0
    %2487 = vmatpush2.msra.mxu0 0.0
    %2488 = vmatprep.subr.mxu0 0.0
    %2489 = vmatpush2.msra.mxu0 0.0
    %2490 = vmatprep.subr.mxu0 0.0
    %2491 = vmatpush2.msra.mxu0 0.0
    %2492 = vmatprep.subr.mxu0 0.0
    %2493 = vmatpush2.msra.mxu0 0.0
    %2494 = vmatprep.subr.mxu0 0.0
    %2495 = vmatpush2.msra.mxu0 0.0
    %2496 = vmatprep.subr.mxu0 0.0
    %2497 = vmatpush2.msra.mxu0 0.0
    %2498 = vmatprep.subr.mxu0 0.0
    %2499 = vmatpush2.msra.mxu0 0.0
    %2500 = vmatprep.subr.mxu0 0.0
    %2501 = vmatpush2.msra.mxu0 0.0
    %2502 = vmatprep.subr.mxu0 0.0
    %2503 = vmatpush2.msra.mxu0 0.0
    %2504 = vmatprep.subr.mxu0 0.0
    %2505 = vmatpush2.msra.mxu0 0.0
    %2506 = vmatprep.subr.mxu0 0.0
    %2507 = vmatpush2.msra.mxu0 0.0
    %2508 = vmatprep.subr.mxu0 0.0
    %2509 = vmatpush2.msra.mxu0 0.0
    %2510 = vmatprep.mubr.f32.mxu0 0.0
    %2511 = vmatmul.mubr.f32.gmra.mxu0 %v1481
    %v2512 = vpop.f32.mrf.mxu0
    %v2513 = vadd.f32 0.0, %v2512
    %v2514 = vpop.f32.mrf.mxu0
    %v2515 = vadd.f32 0.0, %v2514
    %2516 = vdwg.mxu0
    %2517 = vmatprep.subr.mxu0 %v2441
    %2518 = vmatpush1.msra.mxu0 %v2440
    %2519 = vmatprep.subr.mxu0 %v2433
    %2520 = vmatpush1.msra.mxu0 %v2432
    %2521 = vmatprep.subr.mxu0 %v2425
    %2522 = vmatpush1.msra.mxu0 %v2424
    %2523 = vmatprep.subr.mxu0 %v2417
    %2524 = vmatpush1.msra.mxu0 %v2416
    %2525 = vmatprep.subr.mxu0 %v2409
    %2526 = vmatpush1.msra.mxu0 %v2408
    %2527 = vmatprep.subr.mxu0 %v2401
    %2528 = vmatpush1.msra.mxu0 %v2400
    %2529 = vmatprep.subr.mxu0 %v2393
    %2530 = vmatpush1.msra.mxu0 %v2392
    %2531 = vmatprep.subr.mxu0 %v2385
    %2532 = vmatpush1.msra.mxu0 %v2384
    %2533 = vmatprep.subr.mxu0 %v2377
    %2534 = vmatpush1.msra.mxu0 %v2376
    %2535 = vmatprep.subr.mxu0 %v2369
    %2536 = vmatpush1.msra.mxu0 %v2368
    %2537 = vmatprep.subr.mxu0 %v2361
    %2538 = vmatpush1.msra.mxu0 %v2360
    %2539 = vmatprep.subr.mxu0 %v2353
    %2540 = vmatpush1.msra.mxu0 %v2352
    %2541 = vmatprep.subr.mxu0 %v2345
    %2542 = vmatpush1.msra.mxu0 %v2344
    %2543 = vmatprep.subr.mxu0 %v2337
    %2544 = vmatpush1.msra.mxu0 %v2336
    %2545 = vmatprep.subr.mxu0 %v2329
    %2546 = vmatpush1.msra.mxu0 %v2328
    %2547 = vmatprep.subr.mxu0 %v2321
    %2548 = vmatpush1.msra.mxu0 %v2320
    %2549 = vmatprep.subr.mxu0 0.0
    %2550 = vmatpush2.msra.mxu0 0.0
    %2551 = vmatprep.subr.mxu0 0.0
    %2552 = vmatpush2.msra.mxu0 0.0
    %2553 = vmatprep.subr.mxu0 0.0
    %2554 = vmatpush2.msra.mxu0 0.0
    %2555 = vmatprep.subr.mxu0 0.0
    %2556 = vmatpush2.msra.mxu0 0.0
    %2557 = vmatprep.subr.mxu0 0.0
    %2558 = vmatpush2.msra.mxu0 0.0
    %2559 = vmatprep.subr.mxu0 0.0
    %2560 = vmatpush2.msra.mxu0 0.0
    %2561 = vmatprep.subr.mxu0 0.0
    %2562 = vmatpush2.msra.mxu0 0.0
    %2563 = vmatprep.subr.mxu0 0.0
    %2564 = vmatpush2.msra.mxu0 0.0
    %2565 = vmatprep.subr.mxu0 0.0
    %2566 = vmatpush2.msra.mxu0 0.0
    %2567 = vmatprep.subr.mxu0 0.0
    %2568 = vmatpush2.msra.mxu0 0.0
    %2569 = vmatprep.subr.mxu0 0.0
    %2570 = vmatpush2.msra.mxu0 0.0
    %2571 = vmatprep.subr.mxu0 0.0
    %2572 = vmatpush2.msra.mxu0 0.0
    %2573 = vmatprep.subr.mxu0 0.0
    %2574 = vmatpush2.msra.mxu0 0.0
    %2575 = vmatprep.subr.mxu0 0.0
    %2576 = vmatpush2.msra.mxu0 0.0
    %2577 = vmatprep.subr.mxu0 0.0
    %2578 = vmatpush2.msra.mxu0 0.0
    %2579 = vmatprep.subr.mxu0 0.0
    %2580 = vmatpush2.msra.mxu0 0.0
    %2581 = vmatprep.mubr.f32.mxu0 0.0
    %2582 = vmatmul.mubr.f32.gmra.mxu0 %v1481
    %v2583 = vpop.f32.mrf.mxu0
    %v2584 = vadd.f32 0.0, %v2583
    %v2585 = vpop.f32.mrf.mxu0
    %v2586 = vadd.f32 0.0, %v2585
    %2587 = vdwg.mxu0
    %2588 = vmatprep.subr.mxu0 %v2443
    %2589 = vmatpush1.msra.mxu0 %v2442
    %2590 = vmatprep.subr.mxu0 %v2435
    %2591 = vmatpush1.msra.mxu0 %v2434
    %2592 = vmatprep.subr.mxu0 %v2427
    %2593 = vmatpush1.msra.mxu0 %v2426
    %2594 = vmatprep.subr.mxu0 %v2419
    %2595 = vmatpush1.msra.mxu0 %v2418
    %2596 = vmatprep.subr.mxu0 %v2411
    %2597 = vmatpush1.msra.mxu0 %v2410
    %2598 = vmatprep.subr.mxu0 %v2403
    %2599 = vmatpush1.msra.mxu0 %v2402
    %2600 = vmatprep.subr.mxu0 %v2395
    %2601 = vmatpush1.msra.mxu0 %v2394
    %2602 = vmatprep.subr.mxu0 %v2387
    %2603 = vmatpush1.msra.mxu0 %v2386
    %2604 = vmatprep.subr.mxu0 %v2379
    %2605 = vmatpush1.msra.mxu0 %v2378
    %2606 = vmatprep.subr.mxu0 %v2371
    %2607 = vmatpush1.msra.mxu0 %v2370
    %2608 = vmatprep.subr.mxu0 %v2363
    %2609 = vmatpush1.msra.mxu0 %v2362
    %2610 = vmatprep.subr.mxu0 %v2355
    %2611 = vmatpush1.msra.mxu0 %v2354
    %2612 = vmatprep.subr.mxu0 %v2347
    %2613 = vmatpush1.msra.mxu0 %v2346
    %2614 = vmatprep.subr.mxu0 %v2339
    %2615 = vmatpush1.msra.mxu0 %v2338
    %2616 = vmatprep.subr.mxu0 %v2331
    %2617 = vmatpush1.msra.mxu0 %v2330
    %2618 = vmatprep.subr.mxu0 %v2323
    %2619 = vmatpush1.msra.mxu0 %v2322
    %2620 = vmatprep.subr.mxu0 0.0
    %2621 = vmatpush2.msra.mxu0 0.0
    %2622 = vmatprep.subr.mxu0 0.0
    %2623 = vmatpush2.msra.mxu0 0.0
    %2624 = vmatprep.subr.mxu0 0.0
    %2625 = vmatpush2.msra.mxu0 0.0
    %2626 = vmatprep.subr.mxu0 0.0
    %2627 = vmatpush2.msra.mxu0 0.0
    %2628 = vmatprep.subr.mxu0 0.0
    %2629 = vmatpush2.msra.mxu0 0.0
    %2630 = vmatprep.subr.mxu0 0.0
    %2631 = vmatpush2.msra.mxu0 0.0
    %2632 = vmatprep.subr.mxu0 0.0
    %2633 = vmatpush2.msra.mxu0 0.0
    %2634 = vmatprep.subr.mxu0 0.0
    %2635 = vmatpush2.msra.mxu0 0.0
    %2636 = vmatprep.subr.mxu0 0.0
    %2637 = vmatpush2.msra.mxu0 0.0
    %2638 = vmatprep.subr.mxu0 0.0
    %2639 = vmatpush2.msra.mxu0 0.0
    %2640 = vmatprep.subr.mxu0 0.0
    %2641 = vmatpush2.msra.mxu0 0.0
    %2642 = vmatprep.subr.mxu0 0.0
    %2643 = vmatpush2.msra.mxu0 0.0
    %2644 = vmatprep.subr.mxu0 0.0
    %2645 = vmatpush2.msra.mxu0 0.0
    %2646 = vmatprep.subr.mxu0 0.0
    %2647 = vmatpush2.msra.mxu0 0.0
    %2648 = vmatprep.subr.mxu0 0.0
    %2649 = vmatpush2.msra.mxu0 0.0
    %2650 = vmatprep.subr.mxu0 0.0
    %2651 = vmatpush2.msra.mxu0 0.0
    %2652 = vmatprep.mubr.f32.mxu0 0.0
    %2653 = vmatmul.mubr.f32.gmra.mxu0 %v1481
    %v2654 = vpop.f32.mrf.mxu0
    %v2655 = vadd.f32 0.0, %v2654
    %v2656 = vpop.f32.mrf.mxu0
    %v2657 = vadd.f32 0.0, %v2656
    %2658 = vdwg.mxu0
    %2659 = vmatprep.subr.mxu0 %v2445
    %2660 = vmatpush1.msra.mxu0 %v2444
    %2661 = vmatprep.subr.mxu0 %v2437
    %2662 = vmatpush1.msra.mxu0 %v2436
    %2663 = vmatprep.subr.mxu0 %v2429
    %2664 = vmatpush1.msra.mxu0 %v2428
    %2665 = vmatprep.subr.mxu0 %v2421
    %2666 = vmatpush1.msra.mxu0 %v2420
    %2667 = vmatprep.subr.mxu0 %v2413
    %2668 = vmatpush1.msra.mxu0 %v2412
    %2669 = vmatprep.subr.mxu0 %v2405
    %2670 = vmatpush1.msra.mxu0 %v2404
    %2671 = vmatprep.subr.mxu0 %v2397
    %2672 = vmatpush1.msra.mxu0 %v2396
    %2673 = vmatprep.subr.mxu0 %v2389
    %2674 = vmatpush1.msra.mxu0 %v2388
    %2675 = vmatprep.subr.mxu0 %v2381
    %2676 = vmatpush1.msra.mxu0 %v2380
    %2677 = vmatprep.subr.mxu0 %v2373
    %2678 = vmatpush1.msra.mxu0 %v2372
    %2679 = vmatprep.subr.mxu0 %v2365
    %2680 = vmatpush1.msra.mxu0 %v2364
    %2681 = vmatprep.subr.mxu0 %v2357
    %2682 = vmatpush1.msra.mxu0 %v2356
    %2683 = vmatprep.subr.mxu0 %v2349
    %2684 = vmatpush1.msra.mxu0 %v2348
    %2685 = vmatprep.subr.mxu0 %v2341
    %2686 = vmatpush1.msra.mxu0 %v2340
    %2687 = vmatprep.subr.mxu0 %v2333
    %2688 = vmatpush1.msra.mxu0 %v2332
    %2689 = vmatprep.subr.mxu0 %v2325
    %2690 = vmatpush1.msra.mxu0 %v2324
    %2691 = vmatprep.subr.mxu0 0.0
    %2692 = vmatpush2.msra.mxu0 0.0
    %2693 = vmatprep.subr.mxu0 0.0
    %2694 = vmatpush2.msra.mxu0 0.0
    %2695 = vmatprep.subr.mxu0 0.0
    %2696 = vmatpush2.msra.mxu0 0.0
    %2697 = vmatprep.subr.mxu0 0.0
    %2698 = vmatpush2.msra.mxu0 0.0
    %2699 = vmatprep.subr.mxu0 0.0
    %2700 = vmatpush2.msra.mxu0 0.0
    %2701 = vmatprep.subr.mxu0 0.0
    %2702 = vmatpush2.msra.mxu0 0.0
    %2703 = vmatprep.subr.mxu0 0.0
    %2704 = vmatpush2.msra.mxu0 0.0
    %2705 = vmatprep.subr.mxu0 0.0
    %2706 = vmatpush2.msra.mxu0 0.0
    %2707 = vmatprep.subr.mxu0 0.0
    %2708 = vmatpush2.msra.mxu0 0.0
    %2709 = vmatprep.subr.mxu0 0.0
    %2710 = vmatpush2.msra.mxu0 0.0
    %2711 = vmatprep.subr.mxu0 0.0
    %2712 = vmatpush2.msra.mxu0 0.0
    %2713 = vmatprep.subr.mxu0 0.0
    %2714 = vmatpush2.msra.mxu0 0.0
    %2715 = vmatprep.subr.mxu0 0.0
    %2716 = vmatpush2.msra.mxu0 0.0
    %2717 = vmatprep.subr.mxu0 0.0
    %2718 = vmatpush2.msra.mxu0 0.0
    %2719 = vmatprep.subr.mxu0 0.0
    %2720 = vmatpush2.msra.mxu0 0.0
    %2721 = vmatprep.subr.mxu0 0.0
    %2722 = vmatpush2.msra.mxu0 0.0
    %2723 = vmatprep.mubr.f32.mxu0 0.0
    %2724 = vmatmul.mubr.f32.gmra.mxu0 %v1481
    %v2725 = vpop.f32.mrf.mxu0
    %v2726 = vadd.f32 0.0, %v2725
    %v2727 = vpop.f32.mrf.mxu0
    %v2728 = vadd.f32 0.0, %v2727
    %2729 = vdwg.mxu0
    %v2730 = vmax.f32 %v2513, %v2515
    %v2731 = vmax.f32 %v2730, %v2584
    %v2732 = vmax.f32 %v2731, %v2586
    %v2733 = vmax.f32 %v2732, %v2655
    %v2734 = vmax.f32 %v2733, %v2657
    %v2735 = vmax.f32 %v2734, %v2726
    %v2736 = vmax.f32 %v2735, %v2728
    %2737 = vmatprep.subr.mxu0 0.0
    %2738 = vmatpush1.msra.mxu0 0.0
    %2739 = vmatprep.subr.mxu0 0.0
    %2740 = vmatpush1.msra.mxu0 0.0
    %2741 = vmatprep.subr.mxu0 0.0
    %2742 = vmatpush1.msra.mxu0 0.0
    %2743 = vmatprep.subr.mxu0 0.0
    %2744 = vmatpush1.msra.mxu0 0.0
    %2745 = vmatprep.subr.mxu0 0.0
    %2746 = vmatpush1.msra.mxu0 0.0
    %2747 = vmatprep.subr.mxu0 0.0
    %2748 = vmatpush1.msra.mxu0 0.0
    %2749 = vmatprep.subr.mxu0 0.0
    %2750 = vmatpush1.msra.mxu0 0.0
    %2751 = vmatprep.subr.mxu0 0.0
    %2752 = vmatpush1.msra.mxu0 0.0
    %2753 = vmatprep.subr.mxu0 0.0
    %2754 = vmatpush1.msra.mxu0 0.0
    %2755 = vmatprep.subr.mxu0 0.0
    %2756 = vmatpush1.msra.mxu0 0.0
    %2757 = vmatprep.subr.mxu0 0.0
    %2758 = vmatpush1.msra.mxu0 0.0
    %2759 = vmatprep.subr.mxu0 0.0
    %2760 = vmatpush1.msra.mxu0 0.0
    %2761 = vmatprep.subr.mxu0 0.0
    %2762 = vmatpush1.msra.mxu0 0.0
    %2763 = vmatprep.subr.mxu0 0.0
    %2764 = vmatpush1.msra.mxu0 0.0
    %2765 = vmatprep.subr.mxu0 0.0
    %2766 = vmatpush1.msra.mxu0 0.0
    %2767 = vmatprep.subr.mxu0 0.0
    %2768 = vmatpush1.msra.mxu0 %v2736
    %2769 = vmatprep.subr.mxu0 0.0
    %2770 = vmatpush2.msra.mxu0 0.0
    %2771 = vmatprep.subr.mxu0 0.0
    %2772 = vmatpush2.msra.mxu0 0.0
    %2773 = vmatprep.subr.mxu0 0.0
    %2774 = vmatpush2.msra.mxu0 0.0
    %2775 = vmatprep.subr.mxu0 0.0
    %2776 = vmatpush2.msra.mxu0 0.0
    %2777 = vmatprep.subr.mxu0 0.0
    %2778 = vmatpush2.msra.mxu0 0.0
    %2779 = vmatprep.subr.mxu0 0.0
    %2780 = vmatpush2.msra.mxu0 0.0
    %2781 = vmatprep.subr.mxu0 0.0
    %2782 = vmatpush2.msra.mxu0 0.0
    %2783 = vmatprep.subr.mxu0 0.0
    %2784 = vmatpush2.msra.mxu0 0.0
    %2785 = vmatprep.subr.mxu0 0.0
    %2786 = vmatpush2.msra.mxu0 0.0
    %2787 = vmatprep.subr.mxu0 0.0
    %2788 = vmatpush2.msra.mxu0 0.0
    %2789 = vmatprep.subr.mxu0 0.0
    %2790 = vmatpush2.msra.mxu0 0.0
    %2791 = vmatprep.subr.mxu0 0.0
    %2792 = vmatpush2.msra.mxu0 0.0
    %2793 = vmatprep.subr.mxu0 0.0
    %2794 = vmatpush2.msra.mxu0 0.0
    %2795 = vmatprep.subr.mxu0 0.0
    %2796 = vmatpush2.msra.mxu0 0.0
    %2797 = vmatprep.subr.mxu0 0.0
    %2798 = vmatpush2.msra.mxu0 0.0
    %2799 = vmatprep.subr.mxu0 0.0
    %2800 = vmatpush2.msra.mxu0 0.0
    %2801 = vmatprep.mubr.f32.mxu0 0.0
    %2802 = vmatmul.mubr.f32.gmra.mxu0 %v1303
    %v2803 = vpop.f32.mrf.mxu0
    %v2804 = vadd.f32 0.0, %v2803
    %v2805 = vpop.f32.mrf.mxu0
    %2806 = vmatprep.mubr.f32.mxu0 0.0
    %2807 = vmatmul.mubr.f32.gmra.mxu0 %v1306
    %v2808 = vpop.f32.mrf.mxu0
    %v2809 = vadd.f32 0.0, %v2808
    %v2810 = vpop.f32.mrf.mxu0
    %2811 = vdwg.mxu0
    %2812 = vmatprep.subr.mxu0 0.0
    %2813 = vmatpush1.msra.mxu0 0.0
    %2814 = vmatprep.subr.mxu0 0.0
    %2815 = vmatpush1.msra.mxu0 0.0
    %2816 = vmatprep.subr.mxu0 0.0
    %2817 = vmatpush1.msra.mxu0 0.0
    %2818 = vmatprep.subr.mxu0 0.0
    %2819 = vmatpush1.msra.mxu0 0.0
    %2820 = vmatprep.subr.mxu0 0.0
    %2821 = vmatpush1.msra.mxu0 0.0
    %2822 = vmatprep.subr.mxu0 0.0
    %2823 = vmatpush1.msra.mxu0 0.0
    %2824 = vmatprep.subr.mxu0 0.0
    %2825 = vmatpush1.msra.mxu0 0.0
    %2826 = vmatprep.subr.mxu0 0.0
    %2827 = vmatpush1.msra.mxu0 0.0
    %2828 = vmatprep.subr.mxu0 0.0
    %2829 = vmatpush1.msra.mxu0 0.0
    %2830 = vmatprep.subr.mxu0 0.0
    %2831 = vmatpush1.msra.mxu0 0.0
    %2832 = vmatprep.subr.mxu0 0.0
    %2833 = vmatpush1.msra.mxu0 0.0
    %2834 = vmatprep.subr.mxu0 0.0
    %2835 = vmatpush1.msra.mxu0 0.0
    %2836 = vmatprep.subr.mxu0 0.0
    %2837 = vmatpush1.msra.mxu0 0.0
    %2838 = vmatprep.subr.mxu0 0.0
    %2839 = vmatpush1.msra.mxu0 0.0
    %2840 = vmatprep.subr.mxu0 0.0
    %2841 = vmatpush1.msra.mxu0 0.0
    %2842 = vmatprep.subr.mxu0 0.0
    %2843 = vmatpush1.msra.mxu0 %v1481
    %2844 = vmatprep.subr.mxu0 0.0
    %2845 = vmatpush2.msra.mxu0 0.0
    %2846 = vmatprep.subr.mxu0 0.0
    %2847 = vmatpush2.msra.mxu0 0.0
    %2848 = vmatprep.subr.mxu0 0.0
    %2849 = vmatpush2.msra.mxu0 0.0
    %2850 = vmatprep.subr.mxu0 0.0
    %2851 = vmatpush2.msra.mxu0 0.0
    %2852 = vmatprep.subr.mxu0 0.0
    %2853 = vmatpush2.msra.mxu0 0.0
    %2854 = vmatprep.subr.mxu0 0.0
    %2855 = vmatpush2.msra.mxu0 0.0
    %2856 = vmatprep.subr.mxu0 0.0
    %2857 = vmatpush2.msra.mxu0 0.0
    %2858 = vmatprep.subr.mxu0 0.0
    %2859 = vmatpush2.msra.mxu0 0.0
    %2860 = vmatprep.subr.mxu0 0.0
    %2861 = vmatpush2.msra.mxu0 0.0
    %2862 = vmatprep.subr.mxu0 0.0
    %2863 = vmatpush2.msra.mxu0 0.0
    %2864 = vmatprep.subr.mxu0 0.0
    %2865 = vmatpush2.msra.mxu0 0.0
    %2866 = vmatprep.subr.mxu0 0.0
    %2867 = vmatpush2.msra.mxu0 0.0
    %2868 = vmatprep.subr.mxu0 0.0
    %2869 = vmatpush2.msra.mxu0 0.0
    %2870 = vmatprep.subr.mxu0 0.0
    %2871 = vmatpush2.msra.mxu0 0.0
    %2872 = vmatprep.subr.mxu0 0.0
    %2873 = vmatpush2.msra.mxu0 0.0
    %2874 = vmatprep.subr.mxu0 0.0
    %2875 = vmatpush2.msra.mxu0 0.0
    %2876 = vmatprep.mubr.f32.mxu0 0.0
    %2877 = vmatmul.mubr.f32.gmra.mxu0 %v1384
    %v2878 = vpop.f32.mrf.mxu0
    %v2879 = vadd.f32 %v2804, %v2878
    %v2880 = vpop.f32.mrf.mxu0
    %2881 = vmatprep.mubr.f32.mxu0 0.0
    %2882 = vmatmul.mubr.f32.gmra.mxu0 %v1387
    %v2883 = vpop.f32.mrf.mxu0
    %v2884 = vadd.f32 %v2809, %v2883
    %v2885 = vpop.f32.mrf.mxu0
    %2886 = vdwg.mxu0
    %v2887 = vadd.f32 %v2879, %v1467
    %v2888 = vadd.f32 %v2884, %v1472
    %v2889 = vmax.f32 %v2887, 0.0
    %v2890 = vmax.f32 %v2888, 0.0
    %s2891 = scalar_lea.vmem [#allocation2], 16
    %2892 = vst [vmem:[%s2891] sm:$0xff] %v2889
    %2893 = vst [vmem:[%s2891 + $0x8] sm:$0xff] %v2890
    // Predicated region
    $region26: #{tpu_custom_call.1} parent=1 // pred_check
      _
    $region27: #{tpu_custom_call.1} parent=1 // pred_check_branch
      %2895 = sbr.rel (0) target = $region29
    $region28: #{tpu_custom_call.1} parent=1 // pred_region
      %s2897 = ssub.s32 512, 512
      %2898 = vsyncadd [#allocation3], %s2897
      %s2899 = sshll.u32 [#allocation2], 4
      %s2900 = int_to_ptr.vmem [resolvable:$true] %s2899
      %2905 = dma.vmem_to_hbm [thread:$0]  %s2900, 512, %s6, [#allocation3], 128, 128, 8
    $region29: #{tpu_custom_call.1} parent=1 // pred_fallthru
      _
    // Predicated region
    $region30: #{tpu_custom_call.1} parent=1 // pred_check
      _
    $region31: #{tpu_custom_call.1} parent=1 // pred_check_branch
      %2907 = sbr.rel (0) target = $region33
    $region32: #{tpu_custom_call.1} parent=1 // pred_region
      %2908 = dma.done [#allocation3], 512
    $region33: #{tpu_custom_call.1} parent=1 // pred_fallthru
      _
    %2909 = vsyncpa [#allocation3], 1

</llo_original>
